<compile_context>
chip_gen: v7x
topology: tpu7x:2x2x1
jax: 0.10.0
libtpu: 0.0.40
codegen_flags: <defaults>
</compile_context>

<pallas_src>
import functools

import jax
import jax.numpy as jnp
from jax.experimental import pallas as pl
from jax.experimental.pallas import tpu as pltpu


# ---------------------------------------------------------------------------
# Pallas kernel: fused harmonic embedding + MLP for one lane-tile of points
# ---------------------------------------------------------------------------
def sdf_kernel(x_ref, *refs, num_levels, n_hidden, skip):
    """x_ref: (3, TILE_N) -> out_ref: (1, TILE_N).

    refs = (W0_folded, W1, b1, ..., W_out, b_out, out_ref, emb_scratch)
    """
    emb_ref = refs[-1]                     # (K_pad, TILE_N) VMEM scratch, bf16
    out_ref = refs[-2]                     # (1, TILE_N)
    w_refs = refs[:-2]

    mxu_dtype = emb_ref.dtype
    x = x_ref[...].astype(jnp.float32)     # (3, TILE_N), points on the lane axis
    tile_n = x.shape[1]
    k_pad = emb_ref.shape[0]

    # ---- Harmonic embedding, written straight into VMEM scratch (no concat). ----
    # Ordering: [x, sin(2^0 x), cos(2^0 x), ..., sin(2^{L-1} x), cos(2^{L-1} x)].
    emb_ref[pl.ds(0, 3), :] = x.astype(mxu_dtype)
    off = 3
    for l in range(num_levels):
        v = x * jnp.float32(2.0 ** l)                      # 1 VPU mul per octave
        emb_ref[pl.ds(off, 3), :] = jnp.sin(v).astype(mxu_dtype)   # EUP
        emb_ref[pl.ds(off + 3, 3), :] = jnp.cos(v).astype(mxu_dtype)
        off += 6

    # Constant rows: one bias-carrier row of ones (b0 is folded into W0's column
    # `off`), then zero pad rows up to K_pad. Written every grid step so stale VMEM
    # (possibly NaN) can never leak into the f32 accumulation, and so the kernel is
    # correct even when the point grid is sharded across multiple TensorCores.
    emb_ref[pl.ds(off, 1), :] = jnp.ones((1, tile_n), mxu_dtype)
    n_zero = k_pad - off - 1
    if n_zero > 0:
        emb_ref[pl.ds(off + 1, n_zero), :] = jnp.zeros((n_zero, tile_n), mxu_dtype)

    # ---- MLP: W(out,in) @ h(in,TILE_N) on the MXU, f32 accumulation. ----
    def dense(h, w_ref, b_ref):
        acc = jnp.dot(w_ref[...], h, preferred_element_type=jnp.float32)
        if b_ref is not None:
            acc = acc + b_ref[...]                         # (out, 1) broadcast
        return acc

    # Layer 0: bias already folded into W0 through the ones row.
    h = jnp.maximum(dense(emb_ref[...], w_refs[0], None), 0.0)       # f32 (h0, TILE_N)
    for i in range(1, n_hidden):
        a = jnp.maximum(dense(h.astype(mxu_dtype), w_refs[2 * i - 1], w_refs[2 * i]),
                        0.0)
        h = h + a if skip else a                                     # residual in f32

    out = dense(h.astype(mxu_dtype), w_refs[2 * n_hidden - 1], w_refs[2 * n_hidden])
    out_ref[...] = out.astype(out_ref.dtype)               # lane-dense (1, TILE_N)


# ---------------------------------------------------------------------------
# Parameter construction (deterministic; W is (out, in), b is (out, 1))
# ---------------------------------------------------------------------------
def make_sdf_params(key, num_levels, hidden_dims):
    embed_dim = 3 * (2 * num_levels + 1)
    dims = [embed_dim] + list(hidden_dims) + [1]
    params = []
    for i in range(len(dims) - 1):
        key, k_w, k_b = jax.random.split(key, 3)
        fan_in = dims[i]
        w = jax.random.normal(k_w, (dims[i + 1], dims[i]), jnp.float32) / jnp.sqrt(fan_in)
        b = 0.01 * jax.random.normal(k_b, (dims[i + 1], 1), jnp.float32)
        params.append((w, b))
    return params


# ---------------------------------------------------------------------------
# Wrapper: flatten, tail-pad, transpose (points -> lanes), tile over points
# ---------------------------------------------------------------------------
def sdf_forward(x, params, *, num_levels, skip=True, tile_n=4096,
                mxu_dtype=jnp.bfloat16):
    """x: (..., 3) -> (..., 1) signed distances."""
    assert tile_n % 128 == 0, "tile_n must be a multiple of the 128-lane width"

    orig_leading = x.shape[:-1]
    xf = x.reshape(-1, 3).astype(jnp.float32)
    n = xf.shape[0]

    # Effective tile: don't over-pad tiny inputs; split large single-tile cases in
    # two so both v7x TensorCores get work on the "parallel" grid axis.
    n128 = max(-(-n // 128) * 128, 128)
    tile_n_eff = min(tile_n, n128)
    if n128 >= 1024 and tile_n_eff >= n128:
        tile_n_eff = -(-(n128 // 2) // 128) * 128

    n_blocks = max(int(pl.cdiv(n, tile_n_eff)), 1)
    n_pad = n_blocks * tile_n_eff
    if n_pad != n:
        xf = jnp.pad(xf, ((0, n_pad - n), (0, 0)))         # tail-pad only
    xt = xf.T                                               # (3, N_pad): points on lanes

    # --- Fold layer-0 bias into a padded W0 (K: embed_dim -> embed_dim_padded). ---
    embed_dim = 3 * (2 * num_levels + 1)
    embed_dim_padded = -(-(embed_dim + 1) // 8) * 8         # +1 row of ones, 8-aligned
    w0, b0 = params[0]
    w0p = jnp.zeros((w0.shape[0], embed_dim_padded), jnp.float32)
    w0p = w0p.at[:, :embed_dim].set(w0)
    w0p = w0p.at[:, embed_dim].set(b0[:, 0])                # bias column hits the 1-row

    n_hidden = len(params) - 1
    flat_params = [w0p.astype(mxu_dtype)]
    for w, b in params[1:]:
        flat_params.append(w.astype(mxu_dtype))
        flat_params.append(b.astype(jnp.float32))

    kernel = functools.partial(sdf_kernel, num_levels=num_levels,
                               n_hidden=n_hidden, skip=skip)

    in_specs = [pl.BlockSpec((3, tile_n_eff), lambda i: (0, i))]
    for p in flat_params:
        # Tiny weights: full-shape block with a constant index_map -> fetched once.
        in_specs.append(pl.BlockSpec(p.shape, lambda i: (0, 0)))

    out = pl.pallas_call(
        kernel,
        out_shape=jax.ShapeDtypeStruct((1, n_pad), jnp.float32),
        grid=(n_blocks,),
        in_specs=in_specs,
        out_specs=pl.BlockSpec((1, tile_n_eff), lambda i: (0, i)),
        scratch_shapes=[pltpu.VMEM((embed_dim_padded, tile_n_eff), mxu_dtype)],
        compiler_params=pltpu.CompilerParams(
            dimension_semantics=("parallel",)),             # megacore-shardable on v7x
    )(xt, *flat_params)

    return out[0, :n].reshape(orig_leading + (1,))


# ---------------------------------------------------------------------------
# Pure-JAX reference (row-major layout, natural bias adds) for correctness checks
# ---------------------------------------------------------------------------
def sdf_reference(x, params, *, num_levels, skip=True, mxu_dtype=jnp.float32):
    xf = x.reshape(-1, 3).astype(jnp.float32)
    feats = [xf]
    for l in range(num_levels):
        v = xf * (2.0 ** l)
        feats.append(jnp.sin(v))
        feats.append(jnp.cos(v))
    h = jnp.concatenate(feats, axis=-1)

    def dense(h, w, b):
        return jnp.dot(h.astype(mxu_dtype), w.T.astype(mxu_dtype),
                       preferred_element_type=jnp.float32) + b.T

    n_hidden = len(params) - 1
    h = jnp.maximum(dense(h, *params[0]), 0.0)
    for i in range(1, n_hidden):
        a = jnp.maximum(dense(h, *params[i]), 0.0)
        h = h + a if skip else a
    out = dense(h, *params[-1])
    return out.reshape(x.shape[:-1] + (1,))


if __name__ == "__main__":
    num_harmonic_levels = 4
    hidden_dims = [32, 32, 32]
    skip_connections = True

    key = jax.random.PRNGKey(0)
    key, k_x, k_x2 = jax.random.split(key, 3)
    params = make_sdf_params(key, num_harmonic_levels, hidden_dims)

    # Small example: x (..., 3) with batch=2, seq=8.
    x = jax.random.normal(k_x, (2, 8, 3), jnp.float32)
    y = sdf_forward(x, params, num_levels=num_harmonic_levels, skip=skip_connections)
    y = jax.block_until_ready(y)

    y_ref = sdf_reference(x, params, num_levels=num_harmonic_levels,
                          skip=skip_connections, mxu_dtype=jnp.bfloat16)
    y_f32 = sdf_reference(x, params, num_levels=num_harmonic_levels,
                          skip=skip_connections, mxu_dtype=jnp.float32)
    assert y.shape == (2, 8, 1), y.shape
    assert jnp.allclose(y, y_ref, atol=1e-2, rtol=1e-2), (
        float(jnp.max(jnp.abs(y - y_ref))))
    assert jnp.allclose(y, y_f32, atol=1e-1, rtol=1e-1), (
        float(jnp.max(jnp.abs(y - y_f32))))

    # Larger, non-multiple point count: exercises multi-block grid + tail padding.
    x2 = jax.random.normal(k_x2, (3, 1111, 3), jnp.float32)
    y2 = jax.block_until_ready(
        sdf_forward(x2, params, num_levels=num_harmonic_levels, skip=skip_connections))
    y2_ref = sdf_reference(x2, params, num_levels=num_harmonic_levels,
                           skip=skip_connections, mxu_dtype=jnp.bfloat16)
    assert y2.shape == (3, 1111, 1), y2.shape
    assert jnp.allclose(y2, y2_ref, atol=1e-2, rtol=1e-2), (
        float(jnp.max(jnp.abs(y2 - y2_ref))))

    print("KERNEL_OK")
</pallas_src>

<mosaic_0001>
module attributes {stable_mosaic.version = 11 : i64} {
  func.func @sdf_kernel(%arg0: i32, %arg1: memref<3x128xf32, #tpu.memory_space<vmem>>, %arg2: memref<32x32xbf16, #tpu.memory_space<vmem>>, %arg3: memref<32x32xbf16, #tpu.memory_space<vmem>>, %arg4: memref<32x1xf32, #tpu.memory_space<vmem>>, %arg5: memref<32x32xbf16, #tpu.memory_space<vmem>>, %arg6: memref<32x1xf32, #tpu.memory_space<vmem>>, %arg7: memref<1x32xbf16, #tpu.memory_space<vmem>>, %arg8: memref<1x1xf32, #tpu.memory_space<vmem>>, %arg9: memref<1x128xf32, #tpu.memory_space<vmem>>, %arg10: memref<32x128xbf16, #tpu.memory_space<vmem>>) attributes {dimension_semantics = [#tpu.dimension_semantics<parallel>], iteration_bounds = array<i64: 1>, scalar_prefetch = 0 : i64, scratch_operands = 1 : i64, tpu.core_type = #tpu.core_type<tc>, window_params = [{transform_indices = @transform_0, window_bounds = array<i64: 3, 128>}, {pipeline_mode = #tpu.pipeline_mode<synchronous>, transform_indices = @transform_1, window_bounds = array<i64: 32, 32>}, {pipeline_mode = #tpu.pipeline_mode<synchronous>, transform_indices = @transform_2, window_bounds = array<i64: 32, 32>}, {pipeline_mode = #tpu.pipeline_mode<synchronous>, transform_indices = @transform_3, window_bounds = array<i64: 32, 1>}, {pipeline_mode = #tpu.pipeline_mode<synchronous>, transform_indices = @transform_4, window_bounds = array<i64: 32, 32>}, {pipeline_mode = #tpu.pipeline_mode<synchronous>, transform_indices = @transform_5, window_bounds = array<i64: 32, 1>}, {pipeline_mode = #tpu.pipeline_mode<synchronous>, transform_indices = @transform_6, window_bounds = array<i64: 1, 32>}, {pipeline_mode = #tpu.pipeline_mode<synchronous>, transform_indices = @transform_7, window_bounds = array<i64: 1, 1>}, {transform_indices = @transform_8, window_bounds = array<i64: 1, 128>}]} {
    %c0 = arith.constant 0 : index
    %c0_0 = arith.constant 0 : index
    %0 = vector.load %arg1[%c0, %c0_0] : memref<3x128xf32, #tpu.memory_space<vmem>>, vector<3x128xf32>
    %1 = arith.truncf %0 : vector<3x128xf32> to vector<3x128xbf16>
    %c0_1 = arith.constant 0 : index
    %c0_2 = arith.constant 0 : index
    %2 = vector.load %arg10[%c0_1, %c0_2] : memref<32x128xbf16, #tpu.memory_space<vmem>>, vector<3x128xbf16>
    tpu.vector_store %arg10[%c0_1, %c0_2], %1 {strides = array<i32>} : memref<32x128xbf16, #tpu.memory_space<vmem>>, vector<3x128xbf16>,
    %cst = arith.constant 1.000000e+00 : f32
    %3 = vector.broadcast %cst : f32 to vector<3x128xf32>
    %4 = arith.mulf %0, %3 : vector<3x128xf32>
    %5 = math.sin %4 : vector<3x128xf32>
    %6 = arith.truncf %5 : vector<3x128xf32> to vector<3x128xbf16>
    %c3 = arith.constant 3 : index
    %c0_3 = arith.constant 0 : index
    %7 = vector.load %arg10[%c3, %c0_3] : memref<32x128xbf16, #tpu.memory_space<vmem>>, vector<3x128xbf16>
    tpu.vector_store %arg10[%c3, %c0_3], %6 {strides = array<i32>} : memref<32x128xbf16, #tpu.memory_space<vmem>>, vector<3x128xbf16>,
    %8 = math.cos %4 : vector<3x128xf32>
    %9 = arith.truncf %8 : vector<3x128xf32> to vector<3x128xbf16>
    %c6 = arith.constant 6 : index
    %c0_4 = arith.constant 0 : index
    %10 = vector.load %arg10[%c6, %c0_4] : memref<32x128xbf16, #tpu.memory_space<vmem>>, vector<3x128xbf16>
    tpu.vector_store %arg10[%c6, %c0_4], %9 {strides = array<i32>} : memref<32x128xbf16, #tpu.memory_space<vmem>>, vector<3x128xbf16>,
    %cst_5 = arith.constant 2.000000e+00 : f32
    %11 = vector.broadcast %cst_5 : f32 to vector<3x128xf32>
    %12 = arith.mulf %0, %11 : vector<3x128xf32>
    %13 = math.sin %12 : vector<3x128xf32>
    %14 = arith.truncf %13 : vector<3x128xf32> to vector<3x128xbf16>
    %c9 = arith.constant 9 : index
    %c0_6 = arith.constant 0 : index
    %15 = vector.load %arg10[%c9, %c0_6] : memref<32x128xbf16, #tpu.memory_space<vmem>>, vector<3x128xbf16>
    tpu.vector_store %arg10[%c9, %c0_6], %14 {strides = array<i32>} : memref<32x128xbf16, #tpu.memory_space<vmem>>, vector<3x128xbf16>,
    %16 = math.cos %12 : vector<3x128xf32>
    %17 = arith.truncf %16 : vector<3x128xf32> to vector<3x128xbf16>
    %c12 = arith.constant 12 : index
    %c0_7 = arith.constant 0 : index
    %18 = vector.load %arg10[%c12, %c0_7] : memref<32x128xbf16, #tpu.memory_space<vmem>>, vector<3x128xbf16>
    tpu.vector_store %arg10[%c12, %c0_7], %17 {strides = array<i32>} : memref<32x128xbf16, #tpu.memory_space<vmem>>, vector<3x128xbf16>,
    %cst_8 = arith.constant 4.000000e+00 : f32
    %19 = vector.broadcast %cst_8 : f32 to vector<3x128xf32>
    %20 = arith.mulf %0, %19 : vector<3x128xf32>
    %21 = math.sin %20 : vector<3x128xf32>
    %22 = arith.truncf %21 : vector<3x128xf32> to vector<3x128xbf16>
    %c15 = arith.constant 15 : index
    %c0_9 = arith.constant 0 : index
    %23 = vector.load %arg10[%c15, %c0_9] : memref<32x128xbf16, #tpu.memory_space<vmem>>, vector<3x128xbf16>
    tpu.vector_store %arg10[%c15, %c0_9], %22 {strides = array<i32>} : memref<32x128xbf16, #tpu.memory_space<vmem>>, vector<3x128xbf16>,
    %24 = math.cos %20 : vector<3x128xf32>
    %25 = arith.truncf %24 : vector<3x128xf32> to vector<3x128xbf16>
    %c18 = arith.constant 18 : index
    %c0_10 = arith.constant 0 : index
    %26 = vector.load %arg10[%c18, %c0_10] : memref<32x128xbf16, #tpu.memory_space<vmem>>, vector<3x128xbf16>
    tpu.vector_store %arg10[%c18, %c0_10], %25 {strides = array<i32>} : memref<32x128xbf16, #tpu.memory_space<vmem>>, vector<3x128xbf16>,
    %cst_11 = arith.constant 8.000000e+00 : f32
    %27 = vector.broadcast %cst_11 : f32 to vector<3x128xf32>
    %28 = arith.mulf %0, %27 : vector<3x128xf32>
    %29 = math.sin %28 : vector<3x128xf32>
    %30 = arith.truncf %29 : vector<3x128xf32> to vector<3x128xbf16>
    %c21 = arith.constant 21 : index
    %c0_12 = arith.constant 0 : index
    %31 = vector.load %arg10[%c21, %c0_12] : memref<32x128xbf16, #tpu.memory_space<vmem>>, vector<3x128xbf16>
    tpu.vector_store %arg10[%c21, %c0_12], %30 {strides = array<i32>} : memref<32x128xbf16, #tpu.memory_space<vmem>>, vector<3x128xbf16>,
    %32 = math.cos %28 : vector<3x128xf32>
    %33 = arith.truncf %32 : vector<3x128xf32> to vector<3x128xbf16>
    %c24 = arith.constant 24 : index
    %c0_13 = arith.constant 0 : index
    %34 = vector.load %arg10[%c24, %c0_13] : memref<32x128xbf16, #tpu.memory_space<vmem>>, vector<3x128xbf16>
    tpu.vector_store %arg10[%c24, %c0_13], %33 {strides = array<i32>} : memref<32x128xbf16, #tpu.memory_space<vmem>>, vector<3x128xbf16>,
    %cst_14 = arith.constant 1.000000e+00 : bf16
    %35 = vector.broadcast %cst_14 : bf16 to vector<1x128xbf16>
    %c27 = arith.constant 27 : index
    %c0_15 = arith.constant 0 : index
    %36 = vector.load %arg10[%c27, %c0_15] : memref<32x128xbf16, #tpu.memory_space<vmem>>, vector<1x128xbf16>
    tpu.vector_store %arg10[%c27, %c0_15], %35 {strides = array<i32>} : memref<32x128xbf16, #tpu.memory_space<vmem>>, vector<1x128xbf16>,
    %cst_16 = arith.constant 0.000000e+00 : bf16
    %37 = vector.broadcast %cst_16 : bf16 to vector<4x128xbf16>
    %c28 = arith.constant 28 : index
    %c0_17 = arith.constant 0 : index
    %38 = vector.load %arg10[%c28, %c0_17] : memref<32x128xbf16, #tpu.memory_space<vmem>>, vector<4x128xbf16>
    tpu.vector_store %arg10[%c28, %c0_17], %37 {strides = array<i32>} : memref<32x128xbf16, #tpu.memory_space<vmem>>, vector<4x128xbf16>,
    %c0_18 = arith.constant 0 : index
    %c0_19 = arith.constant 0 : index
    %39 = vector.load %arg10[%c0_18, %c0_19] : memref<32x128xbf16, #tpu.memory_space<vmem>>, vector<32x128xbf16>
    %c0_20 = arith.constant 0 : index
    %c0_21 = arith.constant 0 : index
    %40 = vector.load %arg2[%c0_20, %c0_21] : memref<32x32xbf16, #tpu.memory_space<vmem>>, vector<32x32xbf16>
    %cst_22 = arith.constant dense<0.000000e+00> : vector<32x128xf32>
    %41 = tpu.matmul %40, %39, %cst_22 {dimension_numbers = #tpu.dot_dimension_numbers<[1], [0], [0], [1], [0, 0, 1, 1], [], []>} : vector<32x32xbf16>, vector<32x128xbf16>, vector<32x128xf32> -> vector<32x128xf32>
    %cst_23 = arith.constant 0.000000e+00 : f32
    %42 = vector.broadcast %cst_23 : f32 to vector<32x128xf32>
    %43 = arith.maximumf %41, %42 : vector<32x128xf32>
    %44 = arith.truncf %43 : vector<32x128xf32> to vector<32x128xbf16>
    %c0_24 = arith.constant 0 : index
    %c0_25 = arith.constant 0 : index
    %45 = vector.load %arg3[%c0_24, %c0_25] : memref<32x32xbf16, #tpu.memory_space<vmem>>, vector<32x32xbf16>
    %cst_26 = arith.constant dense<0.000000e+00> : vector<32x128xf32>
    %46 = tpu.matmul %45, %44, %cst_26 {dimension_numbers = #tpu.dot_dimension_numbers<[1], [0], [0], [1], [0, 0, 1, 1], [], []>} : vector<32x32xbf16>, vector<32x128xbf16>, vector<32x128xf32> -> vector<32x128xf32>
    %c0_27 = arith.constant 0 : index
    %c0_28 = arith.constant 0 : index
    %47 = vector.load %arg4[%c0_27, %c0_28] : memref<32x1xf32, #tpu.memory_space<vmem>>, vector<32x1xf32>
    %48 = vector.broadcast %47 : vector<32x1xf32> to vector<32x128xf32>
    %49 = arith.addf %46, %48 : vector<32x128xf32>
    %cst_29 = arith.constant 0.000000e+00 : f32
    %50 = vector.broadcast %cst_29 : f32 to vector<32x128xf32>
    %51 = arith.maximumf %49, %50 : vector<32x128xf32>
    %52 = arith.addf %43, %51 : vector<32x128xf32>
    %53 = arith.truncf %52 : vector<32x128xf32> to vector<32x128xbf16>
    %c0_30 = arith.constant 0 : index
    %c0_31 = arith.constant 0 : index
    %54 = vector.load %arg5[%c0_30, %c0_31] : memref<32x32xbf16, #tpu.memory_space<vmem>>, vector<32x32xbf16>
    %cst_32 = arith.constant dense<0.000000e+00> : vector<32x128xf32>
    %55 = tpu.matmul %54, %53, %cst_32 {dimension_numbers = #tpu.dot_dimension_numbers<[1], [0], [0], [1], [0, 0, 1, 1], [], []>} : vector<32x32xbf16>, vector<32x128xbf16>, vector<32x128xf32> -> vector<32x128xf32>
    %c0_33 = arith.constant 0 : index
    %c0_34 = arith.constant 0 : index
    %56 = vector.load %arg6[%c0_33, %c0_34] : memref<32x1xf32, #tpu.memory_space<vmem>>, vector<32x1xf32>
    %57 = vector.broadcast %56 : vector<32x1xf32> to vector<32x128xf32>
    %58 = arith.addf %55, %57 : vector<32x128xf32>
    %cst_35 = arith.constant 0.000000e+00 : f32
    %59 = vector.broadcast %cst_35 : f32 to vector<32x128xf32>
    %60 = arith.maximumf %58, %59 : vector<32x128xf32>
    %61 = arith.addf %52, %60 : vector<32x128xf32>
    %62 = arith.truncf %61 : vector<32x128xf32> to vector<32x128xbf16>
    %c0_36 = arith.constant 0 : index
    %c0_37 = arith.constant 0 : index
    %63 = vector.load %arg7[%c0_36, %c0_37] : memref<1x32xbf16, #tpu.memory_space<vmem>>, vector<1x32xbf16>
    %cst_38 = arith.constant dense<0.000000e+00> : vector<1x128xf32>
    %64 = tpu.matmul %63, %62, %cst_38 {dimension_numbers = #tpu.dot_dimension_numbers<[1], [0], [0], [1], [0, 0, 1, 1], [], []>} : vector<1x32xbf16>, vector<32x128xbf16>, vector<1x128xf32> -> vector<1x128xf32>
    %c0_39 = arith.constant 0 : index
    %c0_40 = arith.constant 0 : index
    %65 = vector.load %arg8[%c0_39, %c0_40] : memref<1x1xf32, #tpu.memory_space<vmem>>, vector<1x1xf32>
    %66 = vector.broadcast %65 : vector<1x1xf32> to vector<1x128xf32>
    %67 = arith.addf %64, %66 : vector<1x128xf32>
    %c0_41 = arith.constant 0 : index
    %c0_42 = arith.constant 0 : index
    %68 = vector.load %arg9[%c0_41, %c0_42] : memref<1x128xf32, #tpu.memory_space<vmem>>, vector<1x128xf32>
    tpu.vector_store %arg9[%c0_41, %c0_42], %67 {strides = array<i32>} : memref<1x128xf32, #tpu.memory_space<vmem>>, vector<1x128xf32>,
    return
  }
  func.func @transform_0(%arg0: i32) -> (i32, i32) {
    %c0_i32 = arith.constant 0 : i32
    %c0_i32_0 = arith.constant 0 : i32
    return %c0_i32, %arg0 : i32, i32
  }
  func.func @transform_1(%arg0: i32) -> (i32, i32) {
    %c0_i32 = arith.constant 0 : i32
    %c0_i32_0 = arith.constant 0 : i32
    %c0_i32_1 = arith.constant 0 : i32
    return %c0_i32, %c0_i32_0 : i32, i32
  }
  func.func @transform_2(%arg0: i32) -> (i32, i32) {
    %c0_i32 = arith.constant 0 : i32
    %c0_i32_0 = arith.constant 0 : i32
    %c0_i32_1 = arith.constant 0 : i32
    return %c0_i32, %c0_i32_0 : i32, i32
  }
  func.func @transform_3(%arg0: i32) -> (i32, i32) {
    %c0_i32 = arith.constant 0 : i32
    %c0_i32_0 = arith.constant 0 : i32
    %c0_i32_1 = arith.constant 0 : i32
    return %c0_i32, %c0_i32_0 : i32, i32
  }
  func.func @transform_4(%arg0: i32) -> (i32, i32) {
    %c0_i32 = arith.constant 0 : i32
    %c0_i32_0 = arith.constant 0 : i32
    %c0_i32_1 = arith.constant 0 : i32
    return %c0_i32, %c0_i32_0 : i32, i32
  }
  func.func @transform_5(%arg0: i32) -> (i32, i32) {
    %c0_i32 = arith.constant 0 : i32
    %c0_i32_0 = arith.constant 0 : i32
    %c0_i32_1 = arith.constant 0 : i32
    return %c0_i32, %c0_i32_0 : i32, i32
  }
  func.func @transform_6(%arg0: i32) -> (i32, i32) {
    %c0_i32 = arith.constant 0 : i32
    %c0_i32_0 = arith.constant 0 : i32
    %c0_i32_1 = arith.constant 0 : i32
    return %c0_i32, %c0_i32_0 : i32, i32
  }
  func.func @transform_7(%arg0: i32) -> (i32, i32) {
    %c0_i32 = arith.constant 0 : i32
    %c0_i32_0 = arith.constant 0 : i32
    %c0_i32_1 = arith.constant 0 : i32
    return %c0_i32, %c0_i32_0 : i32, i32
  }
  func.func @transform_8(%arg0: i32) -> (i32, i32) {
    %c0_i32 = arith.constant 0 : i32
    %c0_i32_0 = arith.constant 0 : i32
    return %c0_i32, %arg0 : i32, i32
  }
}

</mosaic_0001>

<llo_original>
// kernel: tpu_custom_call.1
$region0: #{tpu_custom_call.1}
  #allocation0 [shape = 'u32[]', space=smem, size = 0x4, offset = 0x4, fixed_abs, tag = 'smem constant byte address 0x4 - core index']
  #allocation1 [shape = 'u32[144,128]{1,0:T(1,128)}', space=vmem, size = 0x12000, scoped, tag = 'internal scratch']
  #allocation2 [shape = 'bf16[32,128]{1,0:T(16,128)(2,1)}', space=vmem, size = 0x2000, scoped, tag = 'scratch operand']
  #allocation3 [shape = 'f32[1,1]{1,0:T(1,128)S(1)}', space=vmem, size = 0x200, scoped, tag = 'scoped memory for tpu_custom_call.1']
  %s0 = inlined_call_operand.vmem [shape: f32[3,128], index: 0, kind: input, shape index: {}]
  %s1 = inlined_call_operand.vmem [shape: bf16[32,32], index: 1, kind: input, shape index: {}]
  %s2 = inlined_call_operand.vmem [shape: bf16[32,32], index: 2, kind: input, shape index: {}]
  %s3 = inlined_call_operand.vmem [shape: f32[32,1], index: 3, kind: input, shape index: {}]
  %s4 = inlined_call_operand.vmem [shape: bf16[32,32], index: 4, kind: input, shape index: {}]
  %s5 = inlined_call_operand.vmem [shape: f32[32,1], index: 5, kind: input, shape index: {}]
  %s6 = inlined_call_operand.vmem [shape: bf16[1,32], index: 6, kind: input, shape index: {}]
  %s7 = inlined_call_operand.<no memory space> [shape: f32[1,1], index: 7, kind: input, shape index: {}]
  %s8 = inlined_call_operand.hbm [shape: f32[1,128], index: 8, kind: output, shape index: {}]
  %s9 = sld [smem:[#allocation0]]
  $region42: #{tpu_custom_call.1} parent=0
    _
  %s11 = ssub.s32 1, %s9
  %s12 = scalar_select 0, %s11, %s9
  %v13 = vstv %s7
  %14 = vst [vmem:[#allocation3] sm:$0x1] %v13
  $region1: #{tpu_custom_call.1} parent=0
    #allocation4 [shape = 'u8[512]{0}', space=vmem, size = 0x400, scoped, tag = 'output window, operand 0, single buffered']
    #allocation5 [shape = 's32[1]{0}', space=sflag, size = 0x4, scoped, tag = 'scoped memory for tpu_custom_call.1']
    %15 = vsyncpa [#allocation5], 0
    // Predicated region
    $region2: #{tpu_custom_call.1} parent=1 // pred_check
      _
    $region3: #{tpu_custom_call.1} parent=1 // pred_check_branch
      %17 = sbr.rel (0) target = $region5
    $region4: #{tpu_custom_call.1} parent=1 // pred_region
      _
    $region5: #{tpu_custom_call.1} parent=1 // pred_fallthru
      _
    // Predicated region
    $region6: #{tpu_custom_call.1} parent=1 // pred_check
      _
    $region7: #{tpu_custom_call.1} parent=1 // pred_check_branch
      %19 = sbr.rel (0) target = $region9
    $region8: #{tpu_custom_call.1} parent=1 // pred_region
      _
    $region9: #{tpu_custom_call.1} parent=1 // pred_fallthru
      _
    // Predicated region
    $region10: #{tpu_custom_call.1} parent=1 // pred_check
      _
    $region11: #{tpu_custom_call.1} parent=1 // pred_check_branch
      %21 = sbr.rel (0) target = $region13
    $region12: #{tpu_custom_call.1} parent=1 // pred_region
      _
    $region13: #{tpu_custom_call.1} parent=1 // pred_fallthru
      _
    // Predicated region
    $region14: #{tpu_custom_call.1} parent=1 // pred_check
      _
    $region15: #{tpu_custom_call.1} parent=1 // pred_check_branch
      %23 = sbr.rel (0) target = $region17
    $region16: #{tpu_custom_call.1} parent=1 // pred_region
      _
    $region17: #{tpu_custom_call.1} parent=1 // pred_fallthru
      _
    // Predicated region
    $region18: #{tpu_custom_call.1} parent=1 // pred_check
      _
    $region19: #{tpu_custom_call.1} parent=1 // pred_check_branch
      %25 = sbr.rel (0) target = $region21
    $region20: #{tpu_custom_call.1} parent=1 // pred_region
      _
    $region21: #{tpu_custom_call.1} parent=1 // pred_fallthru
      _
    // Predicated region
    $region22: #{tpu_custom_call.1} parent=1 // pred_check
      _
    $region23: #{tpu_custom_call.1} parent=1 // pred_check_branch
      %27 = sbr.rel (0) target = $region25
    $region24: #{tpu_custom_call.1} parent=1 // pred_region
      _
    $region25: #{tpu_custom_call.1} parent=1 // pred_fallthru
      _
    // Predicated region
    $region26: #{tpu_custom_call.1} parent=1 // pred_check
      _
    $region27: #{tpu_custom_call.1} parent=1 // pred_check_branch
      %29 = sbr.rel (0) target = $region29
    $region28: #{tpu_custom_call.1} parent=1 // pred_region
      _
    $region29: #{tpu_custom_call.1} parent=1 // pred_fallthru
      _
    // Predicated region
    $region30: #{tpu_custom_call.1} parent=1 // pred_check
      _
    $region31: #{tpu_custom_call.1} parent=1 // pred_check_branch
      %31 = sbr.rel (0) target = $region33
    $region32: #{tpu_custom_call.1} parent=1 // pred_region
      _
    $region33: #{tpu_custom_call.1} parent=1 // pred_fallthru
      _
    %v34 = vld [vmem:[%s0] sm:$0x7]
    %v35 = vpack.c.bf16 %v34, %v34
    %vm36 = vcmask 1041408
    %vm37 = vsmask.f32 1280
    %vm38 = vmand %vm36, %vm37
    %v39 = vld [vmem:[#allocation2] sm:$0x3]
    %v40 = vsel %vm38, %v35, %v39
    %41 = vst [vmem:[#allocation2] sm:$0x3] %v40
    %v42 = vand.u32 2147483647, %v34
    %vm43 = vcmp.le.f32.partialorder %v42, 0.7853982
    %vm44 = vcmp.lt.s32.totalorder %v34, 0
    %v45 = vand.u32 %v34, 2139095040
    %v46 = vshrl.u32 %v45, 23
    %v47 = vsub.s32 %v46, 127
    %v48 = vand.u32 2147483647, %v34
    %v49 = vand.u32 %v48, 8388607
    %v50 = vor.u32 %v49, 8388608
    %v51 = vsub.s32 0, %v50
    %v52 = vadd.s32 %v47, 1
    %vm53 = vcmp.gt.s32.totalorder %v52, 0
    %v54 = vsel %vm53, %v52, 0
    %v55 = vshrl.u32 %v54, 5
    %v56 = vand.u32 %v54, 31
    %v57 = vsub.s32 32, %v56
    %v58 = vshrl.u32 683565275, %v57
    %v59 = vshll.u32 683565275, %v56
    %v60 = vshrl.u32 2475754826, %v57
    %v61 = vor.u32 %v59, %v60
    %v62 = vshll.u32 2475754826, %v56
    %v63 = vshrl.u32 2131351028, %v57
    %v64 = vor.u32 %v62, %v63
    %v65 = vshll.u32 2131351028, %v56
    %v66 = vshrl.u32 2102212464, %v57
    %v67 = vor.u32 %v65, %v66
    %v68 = vshll.u32 2102212464, %v56
    %v69 = vshrl.u32 920167782, %v57
    %v70 = vor.u32 %v68, %v69
    %v71 = vshll.u32 920167782, %v56
    %v72 = vshrl.u32 1326507024, %v57
    %v73 = vor.u32 %v71, %v72
    %vm74 = vcmp.lt.s32.totalorder %v55, 1
    %vm75 = vcmp.lt.s32.totalorder %v55, 2
    %vm76 = vcmp.lt.s32.totalorder %v55, 3
    %vm77 = vcmp.lt.s32.totalorder %v55, 4
    %v78 = vsel %vm74, %v58, %v61
    %v79 = vsel %vm77, %v67, 2102212464
    %v80 = vsel %vm76, %v64, %v79
    %v81 = vsel %vm75, %v78, %v80
    %v82 = vsel %vm74, %v61, %v64
    %v83 = vsel %vm77, %v70, 920167782
    %v84 = vsel %vm76, %v67, %v83
    %v85 = vsel %vm75, %v82, %v84
    %v86 = vsel %vm74, %v64, %v67
    %v87 = vsel %vm77, %v73, 1326507024
    %v88 = vsel %vm76, %v70, %v87
    %v89 = vsel %vm75, %v86, %v88
    %v90 = vshll.u32 %v50, 8
    %v91 = vmul.u32.u64.compose %v90, %v89
    %v92 = vextract.low.u32 %v91
    %v93 = vextract.high.u32 %v91
    %v94 = vmul.u32.u64.compose %v90, %v85
    %v95 = vextract.low.u32 %v94
    %v96 = vextract.high.u32 %v94
    %v97 = vmul.u32 %v90, %v81
    %v98 = vadd.s32 %v93, %v95
    %vm99 = vc.u32 %v93, %v95
    %v100 = vadd.s32 %v96, 1
    %v101 = vsel %vm99, %v100, %v96
    %v102 = vadd.s32 %v97, %v101
    %v103 = vadd.s32 %v102, 536870912
    %v104 = vshrl.u32 %v103, 30
    %v105 = vshll.u32 %v104, 30
    %v106 = vsub.s32 %v102, %v105
    %vm107 = vcmp.lt.s32.totalorder %v106, 0
    %v108 = vsub.s32 0, %v106
    %v109 = vsel %vm107, %v108, %v106
    %v110 = vclz %v109
    %v111 = vsub.s32 %v110, 2
    %vm112 = vcmp.gt.s32.totalorder 0, %v111
    %v113 = vsel %vm112, 0, %v111
    %v114 = vsub.s32 32, %v113
    %v115 = vshll.u32 %v106, %v113
    %v116 = vshrl.u32 %v98, %v114
    %v117 = vor.u32 %v115, %v116
    %v118 = vsub.s32 4294967266, %v113
    %v119 = vadd.s32 %v118, 127
    %v120 = vshll.u32 %v119, 23
    %v121 = vor.u32 4788187, %v120
    %v122 = vand.u32 2147483647, %v121
    %v124 = vcvt.s32.f32 %v117
    %v125 = vmul.f32 %v124, %v122
    %v126 = vxor.u32 %v125, 2147483648
    %v127 = vsel %vm44, %v126, %v125
    %v128 = vsub.s32 4, %v104
    %v129 = vsel %vm44, %v128, %v104
    %v130 = vsel %vm43, %v34, %v127
    %v131 = vsel %vm43, 0, %v129
    %v132 = vcosq.f32.pop %v130
    %v133 = vsinq.f32.pop %v130
    %vm134 = vweird.f32 %v34
    %v135 = vadd.s32 %v131, 3
    %v136 = vand.u32 %v135, 3
    %vm137 = vcmp.lt.s32.totalorder %v136, 2
    %vm138 = vcmp.eq.s32.totalorder %v136, 0
    %v139 = vxor.u32 %v133, 2147483648
    %v140 = vsel %vm138, %v132, %v139
    %vm141 = vcmp.eq.s32.totalorder %v136, 2
    %v142 = vxor.u32 %v132, 2147483648
    %v143 = vsel %vm141, %v142, %v133
    %v144 = vsel %vm137, %v140, %v143
    %v145 = vsel %vm134, nan, %v144
    %v146 = vpack.c.bf16 %v145, %v145
    %v148 = vshrl.u32 %v146, 16
    %v150 = vrot.slane %v148, 6
    %v151 = vshll.u32 %v146, 16
    %v153 = vrot.slane %v151, 7
    %v154 = vor.u32 %v150, %v153
    %vm156 = vcmask 1042433
    %vm157 = vsmask.f32 7942
    %vm158 = vmand %vm156, %vm157
    %v159 = vld [vmem:[#allocation2] sm:$0x6]
    %v160 = vsel %vm158, %v154, %v159
    %161 = vst [vmem:[#allocation2] sm:$0x6] %v160
    %v162 = vand.u32 2147483647, %v34
    %vm163 = vcmp.le.f32.partialorder %v162, 0.7853982
    %vm164 = vcmp.lt.s32.totalorder %v34, 0
    %v165 = vand.u32 %v34, 2139095040
    %v166 = vshrl.u32 %v165, 23
    %v167 = vsub.s32 %v166, 127
    %v168 = vand.u32 2147483647, %v34
    %v169 = vand.u32 %v168, 8388607
    %v170 = vor.u32 %v169, 8388608
    %v171 = vsub.s32 0, %v170
    %v172 = vadd.s32 %v167, 1
    %vm173 = vcmp.gt.s32.totalorder %v172, 0
    %v174 = vsel %vm173, %v172, 0
    %v175 = vshrl.u32 %v174, 5
    %v176 = vand.u32 %v174, 31
    %v177 = vsub.s32 32, %v176
    %v178 = vshrl.u32 683565275, %v177
    %v179 = vshll.u32 683565275, %v176
    %v180 = vshrl.u32 2475754826, %v177
    %v181 = vor.u32 %v179, %v180
    %v182 = vshll.u32 2475754826, %v176
    %v183 = vshrl.u32 2131351028, %v177
    %v184 = vor.u32 %v182, %v183
    %v185 = vshll.u32 2131351028, %v176
    %v186 = vshrl.u32 2102212464, %v177
    %v187 = vor.u32 %v185, %v186
    %v188 = vshll.u32 2102212464, %v176
    %v189 = vshrl.u32 920167782, %v177
    %v190 = vor.u32 %v188, %v189
    %v191 = vshll.u32 920167782, %v176
    %v192 = vshrl.u32 1326507024, %v177
    %v193 = vor.u32 %v191, %v192
    %vm194 = vcmp.lt.s32.totalorder %v175, 1
    %vm195 = vcmp.lt.s32.totalorder %v175, 2
    %vm196 = vcmp.lt.s32.totalorder %v175, 3
    %vm197 = vcmp.lt.s32.totalorder %v175, 4
    %v198 = vsel %vm194, %v178, %v181
    %v199 = vsel %vm197, %v187, 2102212464
    %v200 = vsel %vm196, %v184, %v199
    %v201 = vsel %vm195, %v198, %v200
    %v202 = vsel %vm194, %v181, %v184
    %v203 = vsel %vm197, %v190, 920167782
    %v204 = vsel %vm196, %v187, %v203
    %v205 = vsel %vm195, %v202, %v204
    %v206 = vsel %vm194, %v184, %v187
    %v207 = vsel %vm197, %v193, 1326507024
    %v208 = vsel %vm196, %v190, %v207
    %v209 = vsel %vm195, %v206, %v208
    %v210 = vshll.u32 %v170, 8
    %v211 = vmul.u32.u64.compose %v210, %v209
    %v212 = vextract.low.u32 %v211
    %v213 = vextract.high.u32 %v211
    %v214 = vmul.u32.u64.compose %v210, %v205
    %v215 = vextract.low.u32 %v214
    %v216 = vextract.high.u32 %v214
    %v217 = vmul.u32 %v210, %v201
    %v218 = vadd.s32 %v213, %v215
    %vm219 = vc.u32 %v213, %v215
    %v220 = vadd.s32 %v216, 1
    %v221 = vsel %vm219, %v220, %v216
    %v222 = vadd.s32 %v217, %v221
    %v223 = vadd.s32 %v222, 536870912
    %v224 = vshrl.u32 %v223, 30
    %v225 = vshll.u32 %v224, 30
    %v226 = vsub.s32 %v222, %v225
    %vm227 = vcmp.lt.s32.totalorder %v226, 0
    %v228 = vsub.s32 0, %v226
    %v229 = vsel %vm227, %v228, %v226
    %v230 = vclz %v229
    %v231 = vsub.s32 %v230, 2
    %vm232 = vcmp.gt.s32.totalorder 0, %v231
    %v233 = vsel %vm232, 0, %v231
    %v234 = vsub.s32 32, %v233
    %v235 = vshll.u32 %v226, %v233
    %v236 = vshrl.u32 %v218, %v234
    %v237 = vor.u32 %v235, %v236
    %v238 = vsub.s32 4294967266, %v233
    %v239 = vadd.s32 %v238, 127
    %v240 = vshll.u32 %v239, 23
    %v241 = vor.u32 4788187, %v240
    %v242 = vand.u32 2147483647, %v241
    %v244 = vcvt.s32.f32 %v237
    %v245 = vmul.f32 %v244, %v242
    %v246 = vxor.u32 %v245, 2147483648
    %v247 = vsel %vm164, %v246, %v245
    %v248 = vsub.s32 4, %v224
    %v249 = vsel %vm164, %v248, %v224
    %v250 = vsel %vm163, %v34, %v247
    %v251 = vsel %vm163, 0, %v249
    %v252 = vcosq.f32.pop %v250
    %v253 = vsinq.f32.pop %v250
    %vm254 = vweird.f32 %v34
    %v255 = vand.u32 %v251, 3
    %vm256 = vcmp.lt.s32.totalorder %v255, 2
    %vm257 = vcmp.eq.s32.totalorder %v255, 0
    %v258 = vxor.u32 %v253, 2147483648
    %v259 = vsel %vm257, %v252, %v258
    %vm260 = vcmp.eq.s32.totalorder %v255, 2
    %v261 = vxor.u32 %v252, 2147483648
    %v262 = vsel %vm260, %v261, %v253
    %v263 = vsel %vm256, %v259, %v262
    %v264 = vsel %vm254, nan, %v263
    %v265 = vpack.c.bf16 %v264, %v264
    %v267 = vrot.slane %v265, 5
    %vm269 = vcmask 1044483
    %vm270 = vsmask.f32 4352
    %vm271 = vmand %vm269, %vm270
    %v272 = vld [vmem:[#allocation2] sm:$0x18]
    %v273 = vsel %vm271, %v267, %v272
    %274 = vst [vmem:[#allocation2] sm:$0x18] %v273
    %v275 = vmul.f32 %v34, 2.0
    %v276 = vand.u32 2147483647, %v275
    %vm277 = vcmp.le.f32.partialorder %v276, 0.7853982
    %vm278 = vcmp.lt.s32.totalorder %v275, 0
    %v279 = vand.u32 %v275, 2139095040
    %v280 = vshrl.u32 %v279, 23
    %v281 = vsub.s32 %v280, 127
    %v282 = vand.u32 2147483647, %v275
    %v283 = vand.u32 %v282, 8388607
    %v284 = vor.u32 %v283, 8388608
    %v285 = vsub.s32 0, %v284
    %v286 = vadd.s32 %v281, 1
    %vm287 = vcmp.gt.s32.totalorder %v286, 0
    %v288 = vsel %vm287, %v286, 0
    %v289 = vshrl.u32 %v288, 5
    %v290 = vand.u32 %v288, 31
    %v291 = vsub.s32 32, %v290
    %v292 = vshrl.u32 683565275, %v291
    %v293 = vshll.u32 683565275, %v290
    %v294 = vshrl.u32 2475754826, %v291
    %v295 = vor.u32 %v293, %v294
    %v296 = vshll.u32 2475754826, %v290
    %v297 = vshrl.u32 2131351028, %v291
    %v298 = vor.u32 %v296, %v297
    %v299 = vshll.u32 2131351028, %v290
    %v300 = vshrl.u32 2102212464, %v291
    %v301 = vor.u32 %v299, %v300
    %v302 = vshll.u32 2102212464, %v290
    %v303 = vshrl.u32 920167782, %v291
    %v304 = vor.u32 %v302, %v303
    %v305 = vshll.u32 920167782, %v290
    %v306 = vshrl.u32 1326507024, %v291
    %v307 = vor.u32 %v305, %v306
    %vm308 = vcmp.lt.s32.totalorder %v289, 1
    %vm309 = vcmp.lt.s32.totalorder %v289, 2
    %vm310 = vcmp.lt.s32.totalorder %v289, 3
    %vm311 = vcmp.lt.s32.totalorder %v289, 4
    %v312 = vsel %vm308, %v292, %v295
    %v313 = vsel %vm311, %v301, 2102212464
    %v314 = vsel %vm310, %v298, %v313
    %v315 = vsel %vm309, %v312, %v314
    %v316 = vsel %vm308, %v295, %v298
    %v317 = vsel %vm311, %v304, 920167782
    %v318 = vsel %vm310, %v301, %v317
    %v319 = vsel %vm309, %v316, %v318
    %v320 = vsel %vm308, %v298, %v301
    %v321 = vsel %vm311, %v307, 1326507024
    %v322 = vsel %vm310, %v304, %v321
    %v323 = vsel %vm309, %v320, %v322
    %v324 = vshll.u32 %v284, 8
    %v325 = vmul.u32.u64.compose %v324, %v323
    %v326 = vextract.low.u32 %v325
    %v327 = vextract.high.u32 %v325
    %v328 = vmul.u32.u64.compose %v324, %v319
    %v329 = vextract.low.u32 %v328
    %v330 = vextract.high.u32 %v328
    %v331 = vmul.u32 %v324, %v315
    %v332 = vadd.s32 %v327, %v329
    %vm333 = vc.u32 %v327, %v329
    %v334 = vadd.s32 %v330, 1
    %v335 = vsel %vm333, %v334, %v330
    %v336 = vadd.s32 %v331, %v335
    %v337 = vadd.s32 %v336, 536870912
    %v338 = vshrl.u32 %v337, 30
    %v339 = vshll.u32 %v338, 30
    %v340 = vsub.s32 %v336, %v339
    %vm341 = vcmp.lt.s32.totalorder %v340, 0
    %v342 = vsub.s32 0, %v340
    %v343 = vsel %vm341, %v342, %v340
    %v344 = vclz %v343
    %v345 = vsub.s32 %v344, 2
    %vm346 = vcmp.gt.s32.totalorder 0, %v345
    %v347 = vsel %vm346, 0, %v345
    %v348 = vsub.s32 32, %v347
    %v349 = vshll.u32 %v340, %v347
    %v350 = vshrl.u32 %v332, %v348
    %v351 = vor.u32 %v349, %v350
    %v352 = vsub.s32 4294967266, %v347
    %v353 = vadd.s32 %v352, 127
    %v354 = vshll.u32 %v353, 23
    %v355 = vor.u32 4788187, %v354
    %v356 = vand.u32 2147483647, %v355
    %v358 = vcvt.s32.f32 %v351
    %v359 = vmul.f32 %v358, %v356
    %v360 = vxor.u32 %v359, 2147483648
    %v361 = vsel %vm278, %v360, %v359
    %v362 = vsub.s32 4, %v338
    %v363 = vsel %vm278, %v362, %v338
    %v364 = vsel %vm277, %v275, %v361
    %v365 = vsel %vm277, 0, %v363
    %v366 = vcosq.f32.pop %v364
    %v367 = vsinq.f32.pop %v364
    %vm368 = vweird.f32 %v275
    %v369 = vadd.s32 %v365, 3
    %v370 = vand.u32 %v369, 3
    %vm371 = vcmp.lt.s32.totalorder %v370, 2
    %vm372 = vcmp.eq.s32.totalorder %v370, 0
    %v373 = vxor.u32 %v367, 2147483648
    %v374 = vsel %vm372, %v366, %v373
    %vm375 = vcmp.eq.s32.totalorder %v370, 2
    %v376 = vxor.u32 %v366, 2147483648
    %v377 = vsel %vm375, %v376, %v367
    %v378 = vsel %vm371, %v374, %v377
    %v379 = vsel %vm368, nan, %v378
    %v380 = vpack.c.bf16 %v379, %v379
    %v382 = vshrl.u32 %v380, 16
    %v384 = vrot.slane %v382, 3
    %v385 = vshll.u32 %v380, 16
    %v387 = vrot.slane %v385, 4
    %v388 = vor.u32 %v384, %v387
    %vm390 = vcmask 1045508
    %vm391 = vsmask.f32 7954
    %vm392 = vmand %vm390, %vm391
    %v393 = vld [vmem:[#allocation2] sm:$0x30]
    %v394 = vsel %vm392, %v388, %v393
    %395 = vst [vmem:[#allocation2] sm:$0x30] %v394
    %v396 = vand.u32 2147483647, %v275
    %vm397 = vcmp.le.f32.partialorder %v396, 0.7853982
    %vm398 = vcmp.lt.s32.totalorder %v275, 0
    %v399 = vand.u32 %v275, 2139095040
    %v400 = vshrl.u32 %v399, 23
    %v401 = vsub.s32 %v400, 127
    %v402 = vand.u32 2147483647, %v275
    %v403 = vand.u32 %v402, 8388607
    %v404 = vor.u32 %v403, 8388608
    %v405 = vsub.s32 0, %v404
    %v406 = vadd.s32 %v401, 1
    %vm407 = vcmp.gt.s32.totalorder %v406, 0
    %v408 = vsel %vm407, %v406, 0
    %v409 = vshrl.u32 %v408, 5
    %v410 = vand.u32 %v408, 31
    %v411 = vsub.s32 32, %v410
    %v412 = vshrl.u32 683565275, %v411
    %v413 = vshll.u32 683565275, %v410
    %v414 = vshrl.u32 2475754826, %v411
    %v415 = vor.u32 %v413, %v414
    %v416 = vshll.u32 2475754826, %v410
    %v417 = vshrl.u32 2131351028, %v411
    %v418 = vor.u32 %v416, %v417
    %v419 = vshll.u32 2131351028, %v410
    %v420 = vshrl.u32 2102212464, %v411
    %v421 = vor.u32 %v419, %v420
    %v422 = vshll.u32 2102212464, %v410
    %v423 = vshrl.u32 920167782, %v411
    %v424 = vor.u32 %v422, %v423
    %v425 = vshll.u32 920167782, %v410
    %v426 = vshrl.u32 1326507024, %v411
    %v427 = vor.u32 %v425, %v426
    %vm428 = vcmp.lt.s32.totalorder %v409, 1
    %vm429 = vcmp.lt.s32.totalorder %v409, 2
    %vm430 = vcmp.lt.s32.totalorder %v409, 3
    %vm431 = vcmp.lt.s32.totalorder %v409, 4
    %v432 = vsel %vm428, %v412, %v415
    %v433 = vsel %vm431, %v421, 2102212464
    %v434 = vsel %vm430, %v418, %v433
    %v435 = vsel %vm429, %v432, %v434
    %v436 = vsel %vm428, %v415, %v418
    %v437 = vsel %vm431, %v424, 920167782
    %v438 = vsel %vm430, %v421, %v437
    %v439 = vsel %vm429, %v436, %v438
    %v440 = vsel %vm428, %v418, %v421
    %v441 = vsel %vm431, %v427, 1326507024
    %v442 = vsel %vm430, %v424, %v441
    %v443 = vsel %vm429, %v440, %v442
    %v444 = vshll.u32 %v404, 8
    %v445 = vmul.u32.u64.compose %v444, %v443
    %v446 = vextract.low.u32 %v445
    %v447 = vextract.high.u32 %v445
    %v448 = vmul.u32.u64.compose %v444, %v439
    %v449 = vextract.low.u32 %v448
    %v450 = vextract.high.u32 %v448
    %v451 = vmul.u32 %v444, %v435
    %v452 = vadd.s32 %v447, %v449
    %vm453 = vc.u32 %v447, %v449
    %v454 = vadd.s32 %v450, 1
    %v455 = vsel %vm453, %v454, %v450
    %v456 = vadd.s32 %v451, %v455
    %v457 = vadd.s32 %v456, 536870912
    %v458 = vshrl.u32 %v457, 30
    %v459 = vshll.u32 %v458, 30
    %v460 = vsub.s32 %v456, %v459
    %vm461 = vcmp.lt.s32.totalorder %v460, 0
    %v462 = vsub.s32 0, %v460
    %v463 = vsel %vm461, %v462, %v460
    %v464 = vclz %v463
    %v465 = vsub.s32 %v464, 2
    %vm466 = vcmp.gt.s32.totalorder 0, %v465
    %v467 = vsel %vm466, 0, %v465
    %v468 = vsub.s32 32, %v467
    %v469 = vshll.u32 %v460, %v467
    %v470 = vshrl.u32 %v452, %v468
    %v471 = vor.u32 %v469, %v470
    %v472 = vsub.s32 4294967266, %v467
    %v473 = vadd.s32 %v472, 127
    %v474 = vshll.u32 %v473, 23
    %v475 = vor.u32 4788187, %v474
    %v476 = vand.u32 2147483647, %v475
    %v478 = vcvt.s32.f32 %v471
    %v479 = vmul.f32 %v478, %v476
    %v480 = vxor.u32 %v479, 2147483648
    %v481 = vsel %vm398, %v480, %v479
    %v482 = vsub.s32 4, %v458
    %v483 = vsel %vm398, %v482, %v458
    %v484 = vsel %vm397, %v275, %v481
    %v485 = vsel %vm397, 0, %v483
    %v486 = vcosq.f32.pop %v484
    %v487 = vsinq.f32.pop %v484
    %vm488 = vweird.f32 %v275
    %v489 = vand.u32 %v485, 3
    %vm490 = vcmp.lt.s32.totalorder %v489, 2
    %vm491 = vcmp.eq.s32.totalorder %v489, 0
    %v492 = vxor.u32 %v487, 2147483648
    %v493 = vsel %vm491, %v486, %v492
    %vm494 = vcmp.eq.s32.totalorder %v489, 2
    %v495 = vxor.u32 %v486, 2147483648
    %v496 = vsel %vm494, %v495, %v487
    %v497 = vsel %vm490, %v493, %v496
    %v498 = vsel %vm488, nan, %v497
    %v499 = vpack.c.bf16 %v498, %v498
    %v501 = vrot.slane %v499, 2
    %vm503 = vcmask 1047558
    %vm504 = vsmask.f32 7424
    %vm505 = vmand %vm503, %vm504
    %v506 = vld [vmem:[#allocation2] sm:$0xc0]
    %v507 = vsel %vm505, %v501, %v506
    %508 = vst [vmem:[#allocation2] sm:$0xc0] %v507
    %v509 = vmul.f32 %v34, 4.0
    %v510 = vand.u32 2147483647, %v509
    %vm511 = vcmp.le.f32.partialorder %v510, 0.7853982
    %vm512 = vcmp.lt.s32.totalorder %v509, 0
    %v513 = vand.u32 %v509, 2139095040
    %v514 = vshrl.u32 %v513, 23
    %v515 = vsub.s32 %v514, 127
    %v516 = vand.u32 2147483647, %v509
    %v517 = vand.u32 %v516, 8388607
    %v518 = vor.u32 %v517, 8388608
    %v519 = vsub.s32 0, %v518
    %v520 = vadd.s32 %v515, 1
    %vm521 = vcmp.gt.s32.totalorder %v520, 0
    %v522 = vsel %vm521, %v520, 0
    %v523 = vshrl.u32 %v522, 5
    %v524 = vand.u32 %v522, 31
    %v525 = vsub.s32 32, %v524
    %v526 = vshrl.u32 683565275, %v525
    %v527 = vshll.u32 683565275, %v524
    %v528 = vshrl.u32 2475754826, %v525
    %v529 = vor.u32 %v527, %v528
    %v530 = vshll.u32 2475754826, %v524
    %v531 = vshrl.u32 2131351028, %v525
    %v532 = vor.u32 %v530, %v531
    %v533 = vshll.u32 2131351028, %v524
    %v534 = vshrl.u32 2102212464, %v525
    %v535 = vor.u32 %v533, %v534
    %v536 = vshll.u32 2102212464, %v524
    %v537 = vshrl.u32 920167782, %v525
    %v538 = vor.u32 %v536, %v537
    %v539 = vshll.u32 920167782, %v524
    %v540 = vshrl.u32 1326507024, %v525
    %v541 = vor.u32 %v539, %v540
    %vm542 = vcmp.lt.s32.totalorder %v523, 1
    %vm543 = vcmp.lt.s32.totalorder %v523, 2
    %vm544 = vcmp.lt.s32.totalorder %v523, 3
    %vm545 = vcmp.lt.s32.totalorder %v523, 4
    %v546 = vsel %vm542, %v526, %v529
    %v547 = vsel %vm545, %v535, 2102212464
    %v548 = vsel %vm544, %v532, %v547
    %v549 = vsel %vm543, %v546, %v548
    %v550 = vsel %vm542, %v529, %v532
    %v551 = vsel %vm545, %v538, 920167782
    %v552 = vsel %vm544, %v535, %v551
    %v553 = vsel %vm543, %v550, %v552
    %v554 = vsel %vm542, %v532, %v535
    %v555 = vsel %vm545, %v541, 1326507024
    %v556 = vsel %vm544, %v538, %v555
    %v557 = vsel %vm543, %v554, %v556
    %v558 = vshll.u32 %v518, 8
    %v559 = vmul.u32.u64.compose %v558, %v557
    %v560 = vextract.low.u32 %v559
    %v561 = vextract.high.u32 %v559
    %v562 = vmul.u32.u64.compose %v558, %v553
    %v563 = vextract.low.u32 %v562
    %v564 = vextract.high.u32 %v562
    %v565 = vmul.u32 %v558, %v549
    %v566 = vadd.s32 %v561, %v563
    %vm567 = vc.u32 %v561, %v563
    %v568 = vadd.s32 %v564, 1
    %v569 = vsel %vm567, %v568, %v564
    %v570 = vadd.s32 %v565, %v569
    %v571 = vadd.s32 %v570, 536870912
    %v572 = vshrl.u32 %v571, 30
    %v573 = vshll.u32 %v572, 30
    %v574 = vsub.s32 %v570, %v573
    %vm575 = vcmp.lt.s32.totalorder %v574, 0
    %v576 = vsub.s32 0, %v574
    %v577 = vsel %vm575, %v576, %v574
    %v578 = vclz %v577
    %v579 = vsub.s32 %v578, 2
    %vm580 = vcmp.gt.s32.totalorder 0, %v579
    %v581 = vsel %vm580, 0, %v579
    %v582 = vsub.s32 32, %v581
    %v583 = vshll.u32 %v574, %v581
    %v584 = vshrl.u32 %v566, %v582
    %v585 = vor.u32 %v583, %v584
    %v586 = vsub.s32 4294967266, %v581
    %v587 = vadd.s32 %v586, 127
    %v588 = vshll.u32 %v587, 23
    %v589 = vor.u32 4788187, %v588
    %v590 = vand.u32 2147483647, %v589
    %v592 = vcvt.s32.f32 %v585
    %v593 = vmul.f32 %v592, %v590
    %v594 = vxor.u32 %v593, 2147483648
    %v595 = vsel %vm512, %v594, %v593
    %v596 = vsub.s32 4, %v572
    %v597 = vsel %vm512, %v596, %v572
    %v598 = vsel %vm511, %v509, %v595
    %v599 = vsel %vm511, 0, %v597
    %v600 = vcosq.f32.pop %v598
    %v601 = vsinq.f32.pop %v598
    %vm602 = vweird.f32 %v509
    %v603 = vadd.s32 %v599, 3
    %v604 = vand.u32 %v603, 3
    %vm605 = vcmp.lt.s32.totalorder %v604, 2
    %vm606 = vcmp.eq.s32.totalorder %v604, 0
    %v607 = vxor.u32 %v601, 2147483648
    %v608 = vsel %vm606, %v600, %v607
    %vm609 = vcmp.eq.s32.totalorder %v604, 2
    %v610 = vxor.u32 %v600, 2147483648
    %v611 = vsel %vm609, %v610, %v601
    %v612 = vsel %vm605, %v608, %v611
    %v613 = vsel %vm602, nan, %v612
    %v614 = vpack.c.bf16 %v613, %v613
    %v616 = vshll.u32 %v614, 16
    %v618 = vrot.slane %v616, 1
    %v619 = vshrl.u32 %v614, 16
    %v621 = vor.u32 %v619, %v618
    %vm624 = vcmask 1047559
    %vm625 = vsmask.f32 7966
    %vm626 = vmand %vm624, %vm625
    %v627 = vld [vmem:[#allocation2] sm:$0x80]
    %v628 = vsel %vm626, %v618, %v627
    %629 = vst [vmem:[#allocation2] sm:$0x80] %v628
    %630 = vst [vmem:[#allocation2 + $0x8] sm:$0x1] %v621
    %v631 = vand.u32 2147483647, %v509
    %vm632 = vcmp.le.f32.partialorder %v631, 0.7853982
    %vm633 = vcmp.lt.s32.totalorder %v509, 0
    %v634 = vand.u32 %v509, 2139095040
    %v635 = vshrl.u32 %v634, 23
    %v636 = vsub.s32 %v635, 127
    %v637 = vand.u32 2147483647, %v509
    %v638 = vand.u32 %v637, 8388607
    %v639 = vor.u32 %v638, 8388608
    %v640 = vsub.s32 0, %v639
    %v641 = vadd.s32 %v636, 1
    %vm642 = vcmp.gt.s32.totalorder %v641, 0
    %v643 = vsel %vm642, %v641, 0
    %v644 = vshrl.u32 %v643, 5
    %v645 = vand.u32 %v643, 31
    %v646 = vsub.s32 32, %v645
    %v647 = vshrl.u32 683565275, %v646
    %v648 = vshll.u32 683565275, %v645
    %v649 = vshrl.u32 2475754826, %v646
    %v650 = vor.u32 %v648, %v649
    %v651 = vshll.u32 2475754826, %v645
    %v652 = vshrl.u32 2131351028, %v646
    %v653 = vor.u32 %v651, %v652
    %v654 = vshll.u32 2131351028, %v645
    %v655 = vshrl.u32 2102212464, %v646
    %v656 = vor.u32 %v654, %v655
    %v657 = vshll.u32 2102212464, %v645
    %v658 = vshrl.u32 920167782, %v646
    %v659 = vor.u32 %v657, %v658
    %v660 = vshll.u32 920167782, %v645
    %v661 = vshrl.u32 1326507024, %v646
    %v662 = vor.u32 %v660, %v661
    %vm663 = vcmp.lt.s32.totalorder %v644, 1
    %vm664 = vcmp.lt.s32.totalorder %v644, 2
    %vm665 = vcmp.lt.s32.totalorder %v644, 3
    %vm666 = vcmp.lt.s32.totalorder %v644, 4
    %v667 = vsel %vm663, %v647, %v650
    %v668 = vsel %vm666, %v656, 2102212464
    %v669 = vsel %vm665, %v653, %v668
    %v670 = vsel %vm664, %v667, %v669
    %v671 = vsel %vm663, %v650, %v653
    %v672 = vsel %vm666, %v659, 920167782
    %v673 = vsel %vm665, %v656, %v672
    %v674 = vsel %vm664, %v671, %v673
    %v675 = vsel %vm663, %v653, %v656
    %v676 = vsel %vm666, %v662, 1326507024
    %v677 = vsel %vm665, %v659, %v676
    %v678 = vsel %vm664, %v675, %v677
    %v679 = vshll.u32 %v639, 8
    %v680 = vmul.u32.u64.compose %v679, %v678
    %v681 = vextract.low.u32 %v680
    %v682 = vextract.high.u32 %v680
    %v683 = vmul.u32.u64.compose %v679, %v674
    %v684 = vextract.low.u32 %v683
    %v685 = vextract.high.u32 %v683
    %v686 = vmul.u32 %v679, %v670
    %v687 = vadd.s32 %v682, %v684
    %vm688 = vc.u32 %v682, %v684
    %v689 = vadd.s32 %v685, 1
    %v690 = vsel %vm688, %v689, %v685
    %v691 = vadd.s32 %v686, %v690
    %v692 = vadd.s32 %v691, 536870912
    %v693 = vshrl.u32 %v692, 30
    %v694 = vshll.u32 %v693, 30
    %v695 = vsub.s32 %v691, %v694
    %vm696 = vcmp.lt.s32.totalorder %v695, 0
    %v697 = vsub.s32 0, %v695
    %v698 = vsel %vm696, %v697, %v695
    %v699 = vclz %v698
    %v700 = vsub.s32 %v699, 2
    %vm701 = vcmp.gt.s32.totalorder 0, %v700
    %v702 = vsel %vm701, 0, %v700
    %v703 = vsub.s32 32, %v702
    %v704 = vshll.u32 %v695, %v702
    %v705 = vshrl.u32 %v687, %v703
    %v706 = vor.u32 %v704, %v705
    %v707 = vsub.s32 4294967266, %v702
    %v708 = vadd.s32 %v707, 127
    %v709 = vshll.u32 %v708, 23
    %v710 = vor.u32 4788187, %v709
    %v711 = vand.u32 2147483647, %v710
    %v713 = vcvt.s32.f32 %v706
    %v714 = vmul.f32 %v713, %v711
    %v715 = vxor.u32 %v714, 2147483648
    %v716 = vsel %vm633, %v715, %v714
    %v717 = vsub.s32 4, %v693
    %v718 = vsel %vm633, %v717, %v693
    %v719 = vsel %vm632, %v509, %v716
    %v720 = vsel %vm632, 0, %v718
    %v721 = vcosq.f32.pop %v719
    %v722 = vsinq.f32.pop %v719
    %vm723 = vweird.f32 %v509
    %v724 = vand.u32 %v720, 3
    %vm725 = vcmp.lt.s32.totalorder %v724, 2
    %vm726 = vcmp.eq.s32.totalorder %v724, 0
    %v727 = vxor.u32 %v722, 2147483648
    %v728 = vsel %vm726, %v721, %v727
    %vm729 = vcmp.eq.s32.totalorder %v724, 2
    %v730 = vxor.u32 %v721, 2147483648
    %v731 = vsel %vm729, %v730, %v722
    %v732 = vsel %vm725, %v728, %v731
    %v733 = vsel %vm723, nan, %v732
    %v734 = vpack.c.bf16 %v733, %v733
    %v736 = vrot.slane %v734, 7
    %vm738 = vsmask.f32 2304
    %vm739 = vmand %vm156, %vm738
    %v740 = vld [vmem:[#allocation2 + $0x8] sm:$0x6]
    %v741 = vsel %vm739, %v736, %v740
    %742 = vst [vmem:[#allocation2 + $0x8] sm:$0x6] %v741
    %v743 = vmul.f32 %v34, 8.0
    %v744 = vand.u32 2147483647, %v743
    %vm745 = vcmp.le.f32.partialorder %v744, 0.7853982
    %vm746 = vcmp.lt.s32.totalorder %v743, 0
    %v747 = vand.u32 %v743, 2139095040
    %v748 = vshrl.u32 %v747, 23
    %v749 = vsub.s32 %v748, 127
    %v750 = vand.u32 2147483647, %v743
    %v751 = vand.u32 %v750, 8388607
    %v752 = vor.u32 %v751, 8388608
    %v753 = vsub.s32 0, %v752
    %v754 = vadd.s32 %v749, 1
    %vm755 = vcmp.gt.s32.totalorder %v754, 0
    %v756 = vsel %vm755, %v754, 0
    %v757 = vshrl.u32 %v756, 5
    %v758 = vand.u32 %v756, 31
    %v759 = vsub.s32 32, %v758
    %v760 = vshrl.u32 683565275, %v759
    %v761 = vshll.u32 683565275, %v758
    %v762 = vshrl.u32 2475754826, %v759
    %v763 = vor.u32 %v761, %v762
    %v764 = vshll.u32 2475754826, %v758
    %v765 = vshrl.u32 2131351028, %v759
    %v766 = vor.u32 %v764, %v765
    %v767 = vshll.u32 2131351028, %v758
    %v768 = vshrl.u32 2102212464, %v759
    %v769 = vor.u32 %v767, %v768
    %v770 = vshll.u32 2102212464, %v758
    %v771 = vshrl.u32 920167782, %v759
    %v772 = vor.u32 %v770, %v771
    %v773 = vshll.u32 920167782, %v758
    %v774 = vshrl.u32 1326507024, %v759
    %v775 = vor.u32 %v773, %v774
    %vm776 = vcmp.lt.s32.totalorder %v757, 1
    %vm777 = vcmp.lt.s32.totalorder %v757, 2
    %vm778 = vcmp.lt.s32.totalorder %v757, 3
    %vm779 = vcmp.lt.s32.totalorder %v757, 4
    %v780 = vsel %vm776, %v760, %v763
    %v781 = vsel %vm779, %v769, 2102212464
    %v782 = vsel %vm778, %v766, %v781
    %v783 = vsel %vm777, %v780, %v782
    %v784 = vsel %vm776, %v763, %v766
    %v785 = vsel %vm779, %v772, 920167782
    %v786 = vsel %vm778, %v769, %v785
    %v787 = vsel %vm777, %v784, %v786
    %v788 = vsel %vm776, %v766, %v769
    %v789 = vsel %vm779, %v775, 1326507024
    %v790 = vsel %vm778, %v772, %v789
    %v791 = vsel %vm777, %v788, %v790
    %v792 = vshll.u32 %v752, 8
    %v793 = vmul.u32.u64.compose %v792, %v791
    %v794 = vextract.low.u32 %v793
    %v795 = vextract.high.u32 %v793
    %v796 = vmul.u32.u64.compose %v792, %v787
    %v797 = vextract.low.u32 %v796
    %v798 = vextract.high.u32 %v796
    %v799 = vmul.u32 %v792, %v783
    %v800 = vadd.s32 %v795, %v797
    %vm801 = vc.u32 %v795, %v797
    %v802 = vadd.s32 %v798, 1
    %v803 = vsel %vm801, %v802, %v798
    %v804 = vadd.s32 %v799, %v803
    %v805 = vadd.s32 %v804, 536870912
    %v806 = vshrl.u32 %v805, 30
    %v807 = vshll.u32 %v806, 30
    %v808 = vsub.s32 %v804, %v807
    %vm809 = vcmp.lt.s32.totalorder %v808, 0
    %v810 = vsub.s32 0, %v808
    %v811 = vsel %vm809, %v810, %v808
    %v812 = vclz %v811
    %v813 = vsub.s32 %v812, 2
    %vm814 = vcmp.gt.s32.totalorder 0, %v813
    %v815 = vsel %vm814, 0, %v813
    %v816 = vsub.s32 32, %v815
    %v817 = vshll.u32 %v808, %v815
    %v818 = vshrl.u32 %v800, %v816
    %v819 = vor.u32 %v817, %v818
    %v820 = vsub.s32 4294967266, %v815
    %v821 = vadd.s32 %v820, 127
    %v822 = vshll.u32 %v821, 23
    %v823 = vor.u32 4788187, %v822
    %v824 = vand.u32 2147483647, %v823
    %v826 = vcvt.s32.f32 %v819
    %v827 = vmul.f32 %v826, %v824
    %v828 = vxor.u32 %v827, 2147483648
    %v829 = vsel %vm746, %v828, %v827
    %v830 = vsub.s32 4, %v806
    %v831 = vsel %vm746, %v830, %v806
    %v832 = vsel %vm745, %v743, %v829
    %v833 = vsel %vm745, 0, %v831
    %v834 = vcosq.f32.pop %v832
    %v835 = vsinq.f32.pop %v832
    %vm836 = vweird.f32 %v743
    %v837 = vadd.s32 %v833, 3
    %v838 = vand.u32 %v837, 3
    %vm839 = vcmp.lt.s32.totalorder %v838, 2
    %vm840 = vcmp.eq.s32.totalorder %v838, 0
    %v841 = vxor.u32 %v835, 2147483648
    %v842 = vsel %vm840, %v834, %v841
    %vm843 = vcmp.eq.s32.totalorder %v838, 2
    %v844 = vxor.u32 %v834, 2147483648
    %v845 = vsel %vm843, %v844, %v835
    %v846 = vsel %vm839, %v842, %v845
    %v847 = vsel %vm836, nan, %v846
    %v848 = vpack.c.bf16 %v847, %v847
    %v850 = vshrl.u32 %v848, 16
    %v852 = vrot.slane %v850, 5
    %v853 = vshll.u32 %v848, 16
    %v855 = vrot.slane %v853, 6
    %v856 = vor.u32 %v852, %v855
    %vm858 = vcmask 1043458
    %vm859 = vsmask.f32 7946
    %vm860 = vmand %vm858, %vm859
    %v861 = vld [vmem:[#allocation2 + $0x8] sm:$0xc]
    %v862 = vsel %vm860, %v856, %v861
    %863 = vst [vmem:[#allocation2 + $0x8] sm:$0xc] %v862
    %v864 = vand.u32 2147483647, %v743
    %vm865 = vcmp.le.f32.partialorder %v864, 0.7853982
    %vm866 = vcmp.lt.s32.totalorder %v743, 0
    %v867 = vand.u32 %v743, 2139095040
    %v868 = vshrl.u32 %v867, 23
    %v869 = vsub.s32 %v868, 127
    %v870 = vand.u32 2147483647, %v743
    %v871 = vand.u32 %v870, 8388607
    %v872 = vor.u32 %v871, 8388608
    %v873 = vsub.s32 0, %v872
    %v874 = vadd.s32 %v869, 1
    %vm875 = vcmp.gt.s32.totalorder %v874, 0
    %v876 = vsel %vm875, %v874, 0
    %v877 = vshrl.u32 %v876, 5
    %v878 = vand.u32 %v876, 31
    %v879 = vsub.s32 32, %v878
    %v880 = vshrl.u32 683565275, %v879
    %v881 = vshll.u32 683565275, %v878
    %v882 = vshrl.u32 2475754826, %v879
    %v883 = vor.u32 %v881, %v882
    %v884 = vshll.u32 2475754826, %v878
    %v885 = vshrl.u32 2131351028, %v879
    %v886 = vor.u32 %v884, %v885
    %v887 = vshll.u32 2131351028, %v878
    %v888 = vshrl.u32 2102212464, %v879
    %v889 = vor.u32 %v887, %v888
    %v890 = vshll.u32 2102212464, %v878
    %v891 = vshrl.u32 920167782, %v879
    %v892 = vor.u32 %v890, %v891
    %v893 = vshll.u32 920167782, %v878
    %v894 = vshrl.u32 1326507024, %v879
    %v895 = vor.u32 %v893, %v894
    %vm896 = vcmp.lt.s32.totalorder %v877, 1
    %vm897 = vcmp.lt.s32.totalorder %v877, 2
    %vm898 = vcmp.lt.s32.totalorder %v877, 3
    %vm899 = vcmp.lt.s32.totalorder %v877, 4
    %v900 = vsel %vm896, %v880, %v883
    %v901 = vsel %vm899, %v889, 2102212464
    %v902 = vsel %vm898, %v886, %v901
    %v903 = vsel %vm897, %v900, %v902
    %v904 = vsel %vm896, %v883, %v886
    %v905 = vsel %vm899, %v892, 920167782
    %v906 = vsel %vm898, %v889, %v905
    %v907 = vsel %vm897, %v904, %v906
    %v908 = vsel %vm896, %v886, %v889
    %v909 = vsel %vm899, %v895, 1326507024
    %v910 = vsel %vm898, %v892, %v909
    %v911 = vsel %vm897, %v908, %v910
    %v912 = vshll.u32 %v872, 8
    %v913 = vmul.u32.u64.compose %v912, %v911
    %v914 = vextract.low.u32 %v913
    %v915 = vextract.high.u32 %v913
    %v916 = vmul.u32.u64.compose %v912, %v907
    %v917 = vextract.low.u32 %v916
    %v918 = vextract.high.u32 %v916
    %v919 = vmul.u32 %v912, %v903
    %v920 = vadd.s32 %v915, %v917
    %vm921 = vc.u32 %v915, %v917
    %v922 = vadd.s32 %v918, 1
    %v923 = vsel %vm921, %v922, %v918
    %v924 = vadd.s32 %v919, %v923
    %v925 = vadd.s32 %v924, 536870912
    %v926 = vshrl.u32 %v925, 30
    %v927 = vshll.u32 %v926, 30
    %v928 = vsub.s32 %v924, %v927
    %vm929 = vcmp.lt.s32.totalorder %v928, 0
    %v930 = vsub.s32 0, %v928
    %v931 = vsel %vm929, %v930, %v928
    %v932 = vclz %v931
    %v933 = vsub.s32 %v932, 2
    %vm934 = vcmp.gt.s32.totalorder 0, %v933
    %v935 = vsel %vm934, 0, %v933
    %v936 = vsub.s32 32, %v935
    %v937 = vshll.u32 %v928, %v935
    %v938 = vshrl.u32 %v920, %v936
    %v939 = vor.u32 %v937, %v938
    %v940 = vsub.s32 4294967266, %v935
    %v941 = vadd.s32 %v940, 127
    %v942 = vshll.u32 %v941, 23
    %v943 = vor.u32 4788187, %v942
    %v944 = vand.u32 2147483647, %v943
    %v946 = vcvt.s32.f32 %v939
    %v947 = vmul.f32 %v946, %v944
    %v948 = vxor.u32 %v947, 2147483648
    %v949 = vsel %vm866, %v948, %v947
    %v950 = vsub.s32 4, %v926
    %v951 = vsel %vm866, %v950, %v926
    %v952 = vsel %vm865, %v743, %v949
    %v953 = vsel %vm865, 0, %v951
    %v954 = vcosq.f32.pop %v952
    %v955 = vsinq.f32.pop %v952
    %vm956 = vweird.f32 %v743
    %v957 = vand.u32 %v953, 3
    %vm958 = vcmp.lt.s32.totalorder %v957, 2
    %vm959 = vcmp.eq.s32.totalorder %v957, 0
    %v960 = vxor.u32 %v955, 2147483648
    %v961 = vsel %vm959, %v954, %v960
    %vm962 = vcmp.eq.s32.totalorder %v957, 2
    %v963 = vxor.u32 %v954, 2147483648
    %v964 = vsel %vm962, %v963, %v955
    %v965 = vsel %vm958, %v961, %v964
    %v966 = vsel %vm956, nan, %v965
    %v967 = vpack.c.bf16 %v966, %v966
    %v969 = vrot.slane %v967, 4
    %vm971 = vsmask.f32 5376
    %vm972 = vmand %vm390, %vm971
    %v973 = vld [vmem:[#allocation2 + $0x8] sm:$0x30]
    %v974 = vsel %vm972, %v969, %v973
    %975 = vst [vmem:[#allocation2 + $0x8] sm:$0x30] %v974
    %vm976 = vcmask 1045509
    %vm977 = vsmask.f32 7958
    %vm978 = vmand %vm976, %vm977
    %v979 = vld [vmem:[#allocation2 + $0x8] sm:$0x20]
    %v980 = vsel %vm978, 1065369472, %v979
    %981 = vst [vmem:[#allocation2 + $0x8] sm:$0x20] %v980
    %982 = vst [vmem:[#allocation2 + $0x8] sm:$0xc0] 0
    %v983 = vld [vmem:[#allocation2] sm:$0xff]
    %v984 = vld [vmem:[#allocation2 + $0x8] sm:$0xff]
    %v985 = vld [vmem:[%s1] sm:$0xf]
    %v986 = vld [vmem:[%s1 + $0x4] sm:$0xf]
    %v987 = vld [vmem:[%s1 + $0x8] sm:$0xf]
    %v988 = vld [vmem:[%s1 + $0xc] sm:$0xf]
    %v993 = vunpack.c.l.b16 %v985
    %v994 = vunpack.c.l.b16 %v986
    %v995 = vunpack.c.l.b16 %v987
    %v996 = vunpack.c.l.b16 %v988
    %v997 = vpack.c.b16 %v994, %v993
    %v998 = vpack.c.b16 %v996, %v995
    %vm999 = vcmask 261120
    %v1001 = vsel %vm999, %v997, 0
    %v1004 = vsel %vm999, %v998, 0
    %1006 = vmatprep.subr.bf16.mxu0 0
    %1007 = vmatpush1.bf16.msra.mxu0 %v983
    %1008 = vmatprep.subr.bf16.mxu0 0
    %1009 = vmatpush1.bf16.msra.mxu0 %v984
    %1010 = vmatprep.subr.bf16.mxu0 0
    %1011 = vmatpush1.bf16.msra.mxu0 0
    %1012 = vmatprep.subr.bf16.mxu0 0
    %1013 = vmatpush1.bf16.msra.mxu0 0
    %1014 = vmatprep.subr.bf16.mxu0 0
    %1015 = vmatpush1.bf16.msra.mxu0 0
    %1016 = vmatprep.subr.bf16.mxu0 0
    %1017 = vmatpush1.bf16.msra.mxu0 0
    %1018 = vmatprep.subr.bf16.mxu0 0
    %1019 = vmatpush1.bf16.msra.mxu0 0
    %1020 = vmatprep.subr.bf16.mxu0 0
    %1021 = vmatpush1.bf16.msra.mxu0 0
    %1022 = vmatprep.subr.bf16.mxu0 0
    %1023 = vmatpush1.bf16.msra.mxu0 0
    %1024 = vmatprep.subr.bf16.mxu0 0
    %1025 = vmatpush1.bf16.msra.mxu0 0
    %1026 = vmatprep.subr.bf16.mxu0 0
    %1027 = vmatpush1.bf16.msra.mxu0 0
    %1028 = vmatprep.subr.bf16.mxu0 0
    %1029 = vmatpush1.bf16.msra.mxu0 0
    %1030 = vmatprep.subr.bf16.mxu0 0
    %1031 = vmatpush1.bf16.msra.mxu0 0
    %1032 = vmatprep.subr.bf16.mxu0 0
    %1033 = vmatpush1.bf16.msra.mxu0 0
    %1034 = vmatprep.subr.bf16.mxu0 0
    %1035 = vmatpush1.bf16.msra.mxu0 0
    %1036 = vmatprep.subr.bf16.mxu0 0
    %1037 = vmatpush1.bf16.msra.mxu0 0
    %1038 = vmatprep.mubr.bf16.mxu0 0
    %1039 = vmatmul.mubr.bf16.gmra.mrb[0].mxu0 %v1001
    %v1040 = vpop.f32.mrb[0].mxu0
    %v1041 = vadd.f32 0.0, %v1040
    %v1042 = vpop.f32.mrb[0].mxu0
    %v1043 = vpop.f32.mrb[0].mxu0
    %v1044 = vadd.f32 0.0, %v1043
    %v1045 = vpop.f32.mrb[0].mxu0
    %1046 = vmatprep.mubr.bf16.mxu0 0
    %1047 = vmatmul.mubr.bf16.gmra.mrb[0].mxu0 %v1004
    %v1048 = vpop.f32.mrb[0].mxu0
    %v1049 = vadd.f32 0.0, %v1048
    %v1050 = vpop.f32.mrb[0].mxu0
    %v1051 = vpop.f32.mrb[0].mxu0
    %v1052 = vadd.f32 0.0, %v1051
    %v1053 = vpop.f32.mrb[0].mxu0
    %1054 = vdwg.mxu0
    %v1055 = vmax.f32 %v1041, 0.0
    %v1056 = vmax.f32 %v1044, 0.0
    %v1057 = vmax.f32 %v1049, 0.0
    %v1058 = vmax.f32 %v1052, 0.0
    %v1059 = vpack.c.bf16 %v1056, %v1055
    %v1060 = vpack.c.bf16 %v1058, %v1057
    %v1061 = vld [vmem:[%s2] sm:$0xf]
    %v1062 = vld [vmem:[%s2 + $0x4] sm:$0xf]
    %v1063 = vld [vmem:[%s2 + $0x8] sm:$0xf]
    %v1064 = vld [vmem:[%s2 + $0xc] sm:$0xf]
    %v1065 = vld [vmem:[%s3] sm:$0xff]
    %v1066 = vld [vmem:[%s3 + $0x8] sm:$0xff]
    %v1067 = vld [vmem:[%s3 + $0x10] sm:$0xff]
    %v1068 = vld [vmem:[%s3 + $0x18] sm:$0xff]
    %1070 = vset.pattern.permute.xlu0 0
    %1071 = vperm.xlu0 %1070, %v1065
    %v1072 = vpop.permute.xlu0 %1071
    %1075 = vset.pattern.permute.xlu0 0
    %1076 = vperm.xlu0 %1075, %v1066
    %v1077 = vpop.permute.xlu0 %1076
    %1080 = vset.pattern.permute.xlu0 0
    %1081 = vperm.xlu0 %1080, %v1067
    %v1082 = vpop.permute.xlu0 %1081
    %1085 = vset.pattern.permute.xlu0 0
    %1086 = vperm.xlu0 %1085, %v1068
    %v1087 = vpop.permute.xlu0 %1086
    %v1093 = vunpack.c.l.b16 %v1061
    %v1094 = vunpack.c.l.b16 %v1062
    %v1095 = vunpack.c.l.b16 %v1063
    %v1096 = vunpack.c.l.b16 %v1064
    %v1097 = vpack.c.b16 %v1094, %v1093
    %v1098 = vpack.c.b16 %v1096, %v1095
    %v1100 = vsel %vm999, %v1097, 0
    %v1103 = vsel %vm999, %v1098, 0
    %1105 = vmatprep.subr.bf16.mxu0 0
    %1106 = vmatpush1.bf16.msra.mxu0 %v1059
    %1107 = vmatprep.subr.bf16.mxu0 0
    %1108 = vmatpush1.bf16.msra.mxu0 %v1060
    %1109 = vmatprep.subr.bf16.mxu0 0
    %1110 = vmatpush1.bf16.msra.mxu0 0
    %1111 = vmatprep.subr.bf16.mxu0 0
    %1112 = vmatpush1.bf16.msra.mxu0 0
    %1113 = vmatprep.subr.bf16.mxu0 0
    %1114 = vmatpush1.bf16.msra.mxu0 0
    %1115 = vmatprep.subr.bf16.mxu0 0
    %1116 = vmatpush1.bf16.msra.mxu0 0
    %1117 = vmatprep.subr.bf16.mxu0 0
    %1118 = vmatpush1.bf16.msra.mxu0 0
    %1119 = vmatprep.subr.bf16.mxu0 0
    %1120 = vmatpush1.bf16.msra.mxu0 0
    %1121 = vmatprep.subr.bf16.mxu0 0
    %1122 = vmatpush1.bf16.msra.mxu0 0
    %1123 = vmatprep.subr.bf16.mxu0 0
    %1124 = vmatpush1.bf16.msra.mxu0 0
    %1125 = vmatprep.subr.bf16.mxu0 0
    %1126 = vmatpush1.bf16.msra.mxu0 0
    %1127 = vmatprep.subr.bf16.mxu0 0
    %1128 = vmatpush1.bf16.msra.mxu0 0
    %1129 = vmatprep.subr.bf16.mxu0 0
    %1130 = vmatpush1.bf16.msra.mxu0 0
    %1131 = vmatprep.subr.bf16.mxu0 0
    %1132 = vmatpush1.bf16.msra.mxu0 0
    %1133 = vmatprep.subr.bf16.mxu0 0
    %1134 = vmatpush1.bf16.msra.mxu0 0
    %1135 = vmatprep.subr.bf16.mxu0 0
    %1136 = vmatpush1.bf16.msra.mxu0 0
    %1137 = vmatprep.mubr.bf16.mxu0 0
    %1138 = vmatmul.mubr.bf16.gmra.mrb[0].mxu0 %v1100
    %v1139 = vpop.f32.mrb[0].mxu0
    %v1140 = vadd.f32 %v1072, %v1139
    %v1141 = vpop.f32.mrb[0].mxu0
    %v1142 = vpop.f32.mrb[0].mxu0
    %v1143 = vadd.f32 %v1077, %v1142
    %v1144 = vpop.f32.mrb[0].mxu0
    %1145 = vmatprep.mubr.bf16.mxu0 0
    %1146 = vmatmul.mubr.bf16.gmra.mrb[0].mxu0 %v1103
    %v1147 = vpop.f32.mrb[0].mxu0
    %v1148 = vadd.f32 %v1082, %v1147
    %v1149 = vpop.f32.mrb[0].mxu0
    %v1150 = vpop.f32.mrb[0].mxu0
    %v1151 = vadd.f32 %v1087, %v1150
    %v1152 = vpop.f32.mrb[0].mxu0
    %1153 = vdwg.mxu0
    %v1154 = vmax.f32 %v1140, 0.0
    %v1155 = vmax.f32 %v1143, 0.0
    %v1156 = vmax.f32 %v1148, 0.0
    %v1157 = vmax.f32 %v1151, 0.0
    %v1158 = vadd.f32 %v1055, %v1154
    %v1159 = vadd.f32 %v1056, %v1155
    %v1160 = vadd.f32 %v1057, %v1156
    %v1161 = vadd.f32 %v1058, %v1157
    %v1162 = vpack.c.bf16 %v1159, %v1158
    %v1163 = vpack.c.bf16 %v1161, %v1160
    %v1164 = vld [vmem:[%s4] sm:$0xf]
    %v1165 = vld [vmem:[%s4 + $0x4] sm:$0xf]
    %v1166 = vld [vmem:[%s4 + $0x8] sm:$0xf]
    %v1167 = vld [vmem:[%s4 + $0xc] sm:$0xf]
    %v1168 = vld [vmem:[%s5] sm:$0xff]
    %v1169 = vld [vmem:[%s5 + $0x8] sm:$0xff]
    %v1170 = vld [vmem:[%s5 + $0x10] sm:$0xff]
    %v1171 = vld [vmem:[%s5 + $0x18] sm:$0xff]
    %1173 = vset.pattern.permute.xlu0 0
    %1174 = vperm.xlu0 %1173, %v1168
    %v1175 = vpop.permute.xlu0 %1174
    %1178 = vset.pattern.permute.xlu0 0
    %1179 = vperm.xlu0 %1178, %v1169
    %v1180 = vpop.permute.xlu0 %1179
    %1183 = vset.pattern.permute.xlu0 0
    %1184 = vperm.xlu0 %1183, %v1170
    %v1185 = vpop.permute.xlu0 %1184
    %1188 = vset.pattern.permute.xlu0 0
    %1189 = vperm.xlu0 %1188, %v1171
    %v1190 = vpop.permute.xlu0 %1189
    %v1196 = vunpack.c.l.b16 %v1164
    %v1197 = vunpack.c.l.b16 %v1165
    %v1198 = vunpack.c.l.b16 %v1166
    %v1199 = vunpack.c.l.b16 %v1167
    %v1200 = vpack.c.b16 %v1197, %v1196
    %v1201 = vpack.c.b16 %v1199, %v1198
    %v1203 = vsel %vm999, %v1200, 0
    %v1206 = vsel %vm999, %v1201, 0
    %1208 = vmatprep.subr.bf16.mxu0 0
    %1209 = vmatpush1.bf16.msra.mxu0 %v1162
    %1210 = vmatprep.subr.bf16.mxu0 0
    %1211 = vmatpush1.bf16.msra.mxu0 %v1163
    %1212 = vmatprep.subr.bf16.mxu0 0
    %1213 = vmatpush1.bf16.msra.mxu0 0
    %1214 = vmatprep.subr.bf16.mxu0 0
    %1215 = vmatpush1.bf16.msra.mxu0 0
    %1216 = vmatprep.subr.bf16.mxu0 0
    %1217 = vmatpush1.bf16.msra.mxu0 0
    %1218 = vmatprep.subr.bf16.mxu0 0
    %1219 = vmatpush1.bf16.msra.mxu0 0
    %1220 = vmatprep.subr.bf16.mxu0 0
    %1221 = vmatpush1.bf16.msra.mxu0 0
    %1222 = vmatprep.subr.bf16.mxu0 0
    %1223 = vmatpush1.bf16.msra.mxu0 0
    %1224 = vmatprep.subr.bf16.mxu0 0
    %1225 = vmatpush1.bf16.msra.mxu0 0
    %1226 = vmatprep.subr.bf16.mxu0 0
    %1227 = vmatpush1.bf16.msra.mxu0 0
    %1228 = vmatprep.subr.bf16.mxu0 0
    %1229 = vmatpush1.bf16.msra.mxu0 0
    %1230 = vmatprep.subr.bf16.mxu0 0
    %1231 = vmatpush1.bf16.msra.mxu0 0
    %1232 = vmatprep.subr.bf16.mxu0 0
    %1233 = vmatpush1.bf16.msra.mxu0 0
    %1234 = vmatprep.subr.bf16.mxu0 0
    %1235 = vmatpush1.bf16.msra.mxu0 0
    %1236 = vmatprep.subr.bf16.mxu0 0
    %1237 = vmatpush1.bf16.msra.mxu0 0
    %1238 = vmatprep.subr.bf16.mxu0 0
    %1239 = vmatpush1.bf16.msra.mxu0 0
    %1240 = vmatprep.mubr.bf16.mxu0 0
    %1241 = vmatmul.mubr.bf16.gmra.mrb[0].mxu0 %v1203
    %v1242 = vpop.f32.mrb[0].mxu0
    %v1243 = vadd.f32 %v1175, %v1242
    %v1244 = vpop.f32.mrb[0].mxu0
    %v1245 = vpop.f32.mrb[0].mxu0
    %v1246 = vadd.f32 %v1180, %v1245
    %v1247 = vpop.f32.mrb[0].mxu0
    %1248 = vmatprep.mubr.bf16.mxu0 0
    %1249 = vmatmul.mubr.bf16.gmra.mrb[0].mxu0 %v1206
    %v1250 = vpop.f32.mrb[0].mxu0
    %v1251 = vadd.f32 %v1185, %v1250
    %v1252 = vpop.f32.mrb[0].mxu0
    %v1253 = vpop.f32.mrb[0].mxu0
    %v1254 = vadd.f32 %v1190, %v1253
    %v1255 = vpop.f32.mrb[0].mxu0
    %1256 = vdwg.mxu0
    %v1257 = vmax.f32 %v1243, 0.0
    %v1258 = vmax.f32 %v1246, 0.0
    %v1259 = vmax.f32 %v1251, 0.0
    %v1260 = vmax.f32 %v1254, 0.0
    %v1261 = vadd.f32 %v1158, %v1257
    %v1262 = vadd.f32 %v1159, %v1258
    %v1263 = vadd.f32 %v1160, %v1259
    %v1264 = vadd.f32 %v1161, %v1260
    %v1265 = vpack.c.bf16 %v1262, %v1261
    %v1266 = vpack.c.bf16 %v1264, %v1263
    %v1267 = vld [vmem:[%s6] sm:$0x1]
    %v1268 = vld [vmem:[#allocation3] sm:$0x1]
    %1270 = vset.pattern.permute.xlu0 0
    %1271 = vperm.xlu0 %1270, %v1268
    %v1272 = vpop.permute.xlu0 %1271
    %v1274 = vlaneseq
    %v1275 = vshrl.u32 %v1274, 7
    %v1276 = vsub.s32 0, %v1275
    %v1277 = vrot.slane %v1272, %v1276
    %v1279 = vsel %vm999, %v1267, 0
    %1281 = vmatprep.subr.bf16.mxu0 0
    %1282 = vmatpush1.bf16.msra.mxu0 %v1265
    %1283 = vmatprep.subr.bf16.mxu0 0
    %1284 = vmatpush1.bf16.msra.mxu0 %v1266
    %1285 = vmatprep.subr.bf16.mxu0 0
    %1286 = vmatpush1.bf16.msra.mxu0 0
    %1287 = vmatprep.subr.bf16.mxu0 0
    %1288 = vmatpush1.bf16.msra.mxu0 0
    %1289 = vmatprep.subr.bf16.mxu0 0
    %1290 = vmatpush1.bf16.msra.mxu0 0
    %1291 = vmatprep.subr.bf16.mxu0 0
    %1292 = vmatpush1.bf16.msra.mxu0 0
    %1293 = vmatprep.subr.bf16.mxu0 0
    %1294 = vmatpush1.bf16.msra.mxu0 0
    %1295 = vmatprep.subr.bf16.mxu0 0
    %1296 = vmatpush1.bf16.msra.mxu0 0
    %1297 = vmatprep.subr.bf16.mxu0 0
    %1298 = vmatpush1.bf16.msra.mxu0 0
    %1299 = vmatprep.subr.bf16.mxu0 0
    %1300 = vmatpush1.bf16.msra.mxu0 0
    %1301 = vmatprep.subr.bf16.mxu0 0
    %1302 = vmatpush1.bf16.msra.mxu0 0
    %1303 = vmatprep.subr.bf16.mxu0 0
    %1304 = vmatpush1.bf16.msra.mxu0 0
    %1305 = vmatprep.subr.bf16.mxu0 0
    %1306 = vmatpush1.bf16.msra.mxu0 0
    %1307 = vmatprep.subr.bf16.mxu0 0
    %1308 = vmatpush1.bf16.msra.mxu0 0
    %1309 = vmatprep.subr.bf16.mxu0 0
    %1310 = vmatpush1.bf16.msra.mxu0 0
    %1311 = vmatprep.subr.bf16.mxu0 0
    %1312 = vmatpush1.bf16.msra.mxu0 0
    %1313 = vmatprep.mubr.bf16.mxu0 0
    %1314 = vmatmul.mubr.bf16.gmra.mrb[0].mxu0 %v1279
    %v1315 = vpop.f32.mrb[0].mxu0
    %v1316 = vadd.f32 %v1277, %v1315
    %v1317 = vpop.f32.mrb[0].mxu0
    %v1318 = vpop.f32.mrb[0].mxu0
    %v1319 = vpop.f32.mrb[0].mxu0
    %1320 = vdwg.mxu0
    %1321 = vst [vmem:[#allocation4] sm:$0x1] %v1316
    // Predicated region
    $region34: #{tpu_custom_call.1} parent=1 // pred_check
      _
    $region35: #{tpu_custom_call.1} parent=1 // pred_check_branch
      %1323 = sbr.rel (0) target = $region37
    $region36: #{tpu_custom_call.1} parent=1 // pred_region
      %s1325 = ssub.s32 16, 16
      %1326 = vsyncadd [#allocation5], %s1325
      %s1328 = sshll.u32 [#allocation4], 4
      %s1329 = int_to_ptr.vmem [resolvable:$true] %s1328
      %1331 = dma.vmem_to_hbm [thread:$0]  %s1329, 16, %s8, [#allocation5]
    $region37: #{tpu_custom_call.1} parent=1 // pred_fallthru
      _
    // Predicated region
    $region38: #{tpu_custom_call.1} parent=1 // pred_check
      _
    $region39: #{tpu_custom_call.1} parent=1 // pred_check_branch
      %1333 = sbr.rel (0) target = $region41
    $region40: #{tpu_custom_call.1} parent=1 // pred_region
      %1334 = dma.done [#allocation5], 16
    $region41: #{tpu_custom_call.1} parent=1 // pred_fallthru
      _
    %1335 = vsyncpa [#allocation5], 1

</llo_original>
